<compile_context>
chip_gen: v6e
topology: v6e:2x2x1
jax: 0.10.0
libtpu: 0.0.40
codegen_flags: <defaults>
</compile_context>

<pallas_src>
import functools
import numpy as np

import jax
import jax.numpy as jnp
from jax.experimental import pallas as pl
from jax.experimental.pallas import tpu as pltpu

LN_EPS = 1e-5
_SQRT_2_OVER_PI = np.float32(0.7978845608028654)


# ------------------------------- in-kernel helpers -------------------------------

def _layernorm(x, gamma, beta):
    """f32 LayerNorm over the last dim; gamma/beta are (1, D)."""
    mu = jnp.mean(x, axis=-1, keepdims=True)
    var = jnp.mean((x - mu) ** 2, axis=-1, keepdims=True)
    return (x - mu) * jax.lax.rsqrt(var + LN_EPS) * gamma + beta


def _gelu_tanh(x):
    # tanh-approx GELU: transcendental goes to the EUP slot instead of burning VPU ops.
    # Small documented numeric deviation from torch's exact erf GELU.
    return 0.5 * x * (1.0 + jnp.tanh(_SQRT_2_OVER_PI * (x + 0.044715 * x * x * x)))


# ----------------------------------- kernel -------------------------------------

def metaformer_kernel(x_ref,
                      esa_g_ref, esa_b_ref, win_ref, decay_ref, wout_ref,
                      pool_g_ref, pool_b_ref, cmat_ref, pool_w_ref,
                      ff_g_ref, ff_b_ref, w1_ref, w2_ref,
                      fin_g_ref, fin_b_ref, wv_ref,
                      o_ref, x_scr):
    """One (batch b, layer l) grid step of the MetaformerGPT trunk + head."""
    l = pl.program_id(1)

    # ----- residual stream lives in VMEM scratch across the depth axis -----
    @pl.when(l == 0)
    def _():
        x_scr[...] = x_ref[0]                       # (N, D) f32

    x = x_scr[...]                                  # (N, D) f32
    heads = win_ref.shape[1]

    # ------------- MultiheadExponentialTimeDecay + residual -------------
    xn = _layernorm(x, esa_g_ref[0], esa_b_ref[0]).astype(jnp.bfloat16)       # (N, D)
    xn_b = jnp.broadcast_to(xn[None], (heads,) + xn.shape)                    # (H, N, D)
    # head-batched project_in: (H,N,D) @ (H,D,dh) -> (H,N,dh)  (same total FLOPs as xn@Win)
    u_h = jnp.einsum('hnd,hde->hne', xn_b, win_ref[0],
                     preferred_element_type=jnp.float32)
    # per-head causal exponential decay: (H,N,N) @ (H,N,dh) -> (H,N,dh)
    t_h = jnp.einsum('hij,hjd->hid', decay_ref[0], u_h.astype(jnp.bfloat16),
                     preferred_element_type=jnp.float32)
    # head-batched project_out then sum heads: (H,N,dh) @ (H,dh,D) -> (H,N,D) -> (N,D)
    o_h = jnp.einsum('hnd,hde->hne', t_h.astype(jnp.bfloat16), wout_ref[0],
                     preferred_element_type=jnp.float32)
    x = x + jnp.sum(o_h, axis=0)

    # --------------------- MeanCenteringPool + residual ---------------------
    xn = _layernorm(x, pool_g_ref[0], pool_b_ref[0]).astype(jnp.bfloat16)
    y = jnp.dot(cmat_ref[...], xn, preferred_element_type=jnp.float32)        # cummean-x
    x = x + jnp.dot(y.astype(jnp.bfloat16), pool_w_ref[0],
                    preferred_element_type=jnp.float32)

    # -------------------------- FeedForward + residual ------------------------
    xn = _layernorm(x, ff_g_ref[0], ff_b_ref[0]).astype(jnp.bfloat16)
    h1 = jnp.dot(xn, w1_ref[0], preferred_element_type=jnp.float32)
    h1 = _gelu_tanh(h1).astype(jnp.bfloat16)
    x = x + jnp.dot(h1, w2_ref[0], preferred_element_type=jnp.float32)

    x_scr[...] = x

    # ----------------------- final LayerNorm + logits -------------------------
    @pl.when(l == pl.num_programs(1) - 1)
    def _():
        xn_f = _layernorm(x, fin_g_ref[...], fin_b_ref[...]).astype(jnp.bfloat16)
        o_ref[0] = jnp.dot(xn_f, wv_ref[...], preferred_element_type=jnp.float32)


# ------------------------------- host-side builders --------------------------------

def build_decay(alpha_param, n):
    """(H, N, N) causal exp-decay matrices, equivalent to conv1d_fft with ESA weights:
    out[i] = sum_{k<=i} alpha * (1 - alpha)^(i-k) * x[k]."""
    alpha = jax.nn.sigmoid(alpha_param)                              # (H,)
    idx = jnp.arange(n)
    diff = (idx[:, None] - idx[None, :]).astype(jnp.float32)         # (N, N)
    causal = diff >= 0
    decay = alpha[:, None, None] * jnp.power((1.0 - alpha)[:, None, None],
                                             jnp.maximum(diff, 0.0)[None])
    decay = jnp.where(causal[None], decay, 0.0)                      # (H, N, N)
    return decay.astype(jnp.bfloat16)


def build_pool_matrix(n):
    """(N, N) matrix for cummean(x) - x (the '- x' identity is folded in)."""
    idx = jnp.arange(n)
    tri = (idx[None, :] <= idx[:, None]).astype(jnp.float32)         # lower triangular
    cmean = tri / (idx[:, None].astype(jnp.float32) + 1.0)
    return (cmean - jnp.eye(n, dtype=jnp.float32)).astype(jnp.bfloat16)


# ------------------------------- parameter setup -----------------------------------

def init_params(key, *, num_tokens, dim, depth, heads, dim_head, max_seq_len, ff_mult):
    hidden = int(dim * ff_mult)
    inner = heads * dim_head
    keys = jax.random.split(key, 3 + depth)

    def lin(k, fan_in, fan_out):
        return jax.random.normal(k, (fan_in, fan_out), jnp.float32) / np.sqrt(fan_in)

    params = {
        "token_emb": jax.random.normal(keys[0], (num_tokens, dim), jnp.float32) * 0.02,
        "pos_emb": jax.random.normal(keys[1], (max_seq_len, dim), jnp.float32) * 0.02,
        "layers": [],
        "final_g": jnp.ones((1, dim), jnp.float32),
        "final_b": jnp.zeros((1, dim), jnp.float32),
        "to_logits_w": lin(keys[-1], dim, num_tokens),
    }
    for i in range(depth):
        k = jax.random.split(keys[2 + i], 6)
        params["layers"].append({
            "esa_g": jnp.ones((1, dim), jnp.float32),
            "esa_b": jnp.zeros((1, dim), jnp.float32),
            "esa_alpha": jax.random.normal(k[0], (heads,), jnp.float32),
            "esa_win": lin(k[1], dim, inner),
            "esa_wout": lin(k[2], inner, dim),
            "pool_g": jnp.ones((1, dim), jnp.float32),
            "pool_b": jnp.zeros((1, dim), jnp.float32),
            "pool_w": lin(k[3], dim, dim),
            "ff_g": jnp.ones((1, dim), jnp.float32),
            "ff_b": jnp.zeros((1, dim), jnp.float32),
            "ff_w1": lin(k[4], dim, hidden),
            "ff_w2": lin(k[5], hidden, dim),
        })
    return params


# ----------------------------------- forward ---------------------------------------

def metaformer_forward(tokens, params, *, heads, dim_head):
    B, N = tokens.shape
    D = params["token_emb"].shape[-1]
    V = params["to_logits_w"].shape[-1]
    layers = params["layers"]
    depth = len(layers)
    hidden = layers[0]["ff_w1"].shape[-1]
    Vp = ((V + 127) // 128) * 128                    # lane-dense (128-multiple) logits

    # Embedding gathers are glue (no clean tiled form) — done in plain JAX.
    x = params["token_emb"][tokens] + params["pos_emb"][:N][None, :, :]
    x = x.astype(jnp.float32)                        # (B, N, D)

    def stack(name, dtype):
        return jnp.stack([l[name] for l in layers]).astype(dtype)

    # LayerNorm params stay f32; matmul weights streamed per-layer as bf16.
    esa_g, esa_b = stack("esa_g", jnp.float32), stack("esa_b", jnp.float32)
    pool_g, pool_b = stack("pool_g", jnp.float32), stack("pool_b", jnp.float32)
    ff_g, ff_b = stack("ff_g", jnp.float32), stack("ff_b", jnp.float32)
    # head-batched weight layouts: win (depth,H,D,dh), wout (depth,H,dh,D)
    win = (stack("esa_win", jnp.bfloat16)
           .reshape(depth, D, heads, dim_head).transpose(0, 2, 1, 3))
    wout = stack("esa_wout", jnp.bfloat16).reshape(depth, heads, dim_head, D)
    pool_w = stack("pool_w", jnp.bfloat16)
    w1 = stack("ff_w1", jnp.bfloat16)
    w2 = stack("ff_w2", jnp.bfloat16)
    decay = jnp.stack([build_decay(l["esa_alpha"], N) for l in layers])  # (depth,H,N,N)
    cmat = build_pool_matrix(N)                                          # (N, N)
    fin_g = params["final_g"].astype(jnp.float32)
    fin_b = params["final_b"].astype(jnp.float32)
    wv = jnp.zeros((D, Vp), jnp.bfloat16).at[:, :V].set(
        params["to_logits_w"].astype(jnp.bfloat16))

    args = [x, esa_g, esa_b, win, decay, wout,
            pool_g, pool_b, cmat, pool_w,
            ff_g, ff_b, w1, w2, fin_g, fin_b, wv]

    per_layer3 = lambda b, l: (l, 0, 0)
    per_layer4 = lambda b, l: (l, 0, 0, 0)
    shared2 = lambda b, l: (0, 0)

    in_specs = [
        pl.BlockSpec((1, N, D), lambda b, l: (b, 0, 0)),          # x (per batch)
        pl.BlockSpec((1, 1, D), per_layer3),                      # esa_g
        pl.BlockSpec((1, 1, D), per_layer3),                      # esa_b
        pl.BlockSpec((1, heads, D, dim_head), per_layer4),        # win
        pl.BlockSpec((1, heads, N, N), per_layer4),               # decay
        pl.BlockSpec((1, heads, dim_head, D), per_layer4),        # wout
        pl.BlockSpec((1, 1, D), per_layer3),                      # pool_g
        pl.BlockSpec((1, 1, D), per_layer3),                      # pool_b
        pl.BlockSpec((N, N), shared2),                            # cmat (shared)
        pl.BlockSpec((1, D, D), per_layer3),                      # pool_w
        pl.BlockSpec((1, 1, D), per_layer3),                      # ff_g
        pl.BlockSpec((1, 1, D), per_layer3),                      # ff_b
        pl.BlockSpec((1, D, hidden), per_layer3),                 # w1
        pl.BlockSpec((1, hidden, D), per_layer3),                 # w2
        pl.BlockSpec((1, D), shared2),                            # fin_g
        pl.BlockSpec((1, D), shared2),                            # fin_b
        pl.BlockSpec((D, Vp), shared2),                           # wv (padded vocab)
    ]

    grid_spec = pltpu.PrefetchScalarGridSpec(
        num_scalar_prefetch=0,
        grid=(B, depth),
        in_specs=in_specs,
        out_specs=pl.BlockSpec((1, N, Vp), lambda b, l: (b, 0, 0)),
        scratch_shapes=[pltpu.VMEM((N, D), jnp.float32)],         # residual stream
    )

    logits_p = pl.pallas_call(
        metaformer_kernel,
        grid_spec=grid_spec,
        out_shape=jax.ShapeDtypeStruct((B, N, Vp), jnp.float32),
        compiler_params=pltpu.CompilerParams(
            dimension_semantics=("parallel", "arbitrary"),
            vmem_limit_bytes=32 * 1024 * 1024),
    )(*args)
    return logits_p[:, :, :V]


# ------------------------------------ main ------------------------------------------

if __name__ == "__main__":
    NUM_TOKENS, DIM, DEPTH = 64, 32, 2
    HEADS, DIM_HEAD, MAX_SEQ, FF_MULT = 4, 8, 64, 4
    B, N = 2, 8

    key = jax.random.PRNGKey(0)
    pkey, tkey = jax.random.split(key)
    params = init_params(pkey, num_tokens=NUM_TOKENS, dim=DIM, depth=DEPTH,
                         heads=HEADS, dim_head=DIM_HEAD, max_seq_len=MAX_SEQ,
                         ff_mult=FF_MULT)
    tokens = jax.random.randint(tkey, (B, N), 0, NUM_TOKENS, dtype=jnp.int32)

    fwd = jax.jit(functools.partial(metaformer_forward, heads=HEADS, dim_head=DIM_HEAD))
    logits = fwd(tokens, params)
    jax.block_until_ready(logits)

    assert logits.shape == (B, N, NUM_TOKENS), logits.shape
    assert bool(jnp.all(jnp.isfinite(logits)))
    print("KERNEL_OK")
</pallas_src>

<mosaic_0001>
module attributes {stable_mosaic.version = 11 : i64} {
  func.func @metaformer_kernel(%arg0: i32, %arg1: i32, %arg2: memref<1x8x32xf32, #tpu.memory_space<vmem>>, %arg3: memref<1x1x32xf32, #tpu.memory_space<vmem>>, %arg4: memref<1x1x32xf32, #tpu.memory_space<vmem>>, %arg5: memref<1x4x32x8xbf16, #tpu.memory_space<vmem>>, %arg6: memref<1x4x8x8xbf16, #tpu.memory_space<vmem>>, %arg7: memref<1x4x8x32xbf16, #tpu.memory_space<vmem>>, %arg8: memref<1x1x32xf32, #tpu.memory_space<vmem>>, %arg9: memref<1x1x32xf32, #tpu.memory_space<vmem>>, %arg10: memref<8x8xbf16, #tpu.memory_space<vmem>>, %arg11: memref<1x32x32xbf16, #tpu.memory_space<vmem>>, %arg12: memref<1x1x32xf32, #tpu.memory_space<vmem>>, %arg13: memref<1x1x32xf32, #tpu.memory_space<vmem>>, %arg14: memref<1x32x128xbf16, #tpu.memory_space<vmem>>, %arg15: memref<1x128x32xbf16, #tpu.memory_space<vmem>>, %arg16: memref<1x32xf32, #tpu.memory_space<vmem>>, %arg17: memref<1x32xf32, #tpu.memory_space<vmem>>, %arg18: memref<32x128xbf16, #tpu.memory_space<vmem>>, %arg19: memref<1x8x128xf32, #tpu.memory_space<vmem>>, %arg20: memref<8x32xf32, #tpu.memory_space<vmem>>) attributes {dimension_semantics = [#tpu.dimension_semantics<parallel>, #tpu.dimension_semantics<arbitrary>], iteration_bounds = array<i64: 2, 2>, scalar_prefetch = 0 : i64, scratch_operands = 1 : i64, tpu.core_type = #tpu.core_type<tc>, window_params = [{transform_indices = @transform_0, window_bounds = array<i64: 1, 8, 32>}, {transform_indices = @transform_1, window_bounds = array<i64: 1, 1, 32>}, {transform_indices = @transform_2, window_bounds = array<i64: 1, 1, 32>}, {transform_indices = @transform_3, window_bounds = array<i64: 1, 4, 32, 8>}, {transform_indices = @transform_4, window_bounds = array<i64: 1, 4, 8, 8>}, {transform_indices = @transform_5, window_bounds = array<i64: 1, 4, 8, 32>}, {transform_indices = @transform_6, window_bounds = array<i64: 1, 1, 32>}, {transform_indices = @transform_7, window_bounds = array<i64: 1, 1, 32>}, {pipeline_mode = #tpu.pipeline_mode<synchronous>, transform_indices = @transform_8, window_bounds = array<i64: 8, 8>}, {transform_indices = @transform_9, window_bounds = array<i64: 1, 32, 32>}, {transform_indices = @transform_10, window_bounds = array<i64: 1, 1, 32>}, {transform_indices = @transform_11, window_bounds = array<i64: 1, 1, 32>}, {transform_indices = @transform_12, window_bounds = array<i64: 1, 32, 128>}, {transform_indices = @transform_13, window_bounds = array<i64: 1, 128, 32>}, {pipeline_mode = #tpu.pipeline_mode<synchronous>, transform_indices = @transform_14, window_bounds = array<i64: 1, 32>}, {pipeline_mode = #tpu.pipeline_mode<synchronous>, transform_indices = @transform_15, window_bounds = array<i64: 1, 32>}, {pipeline_mode = #tpu.pipeline_mode<synchronous>, transform_indices = @transform_16, window_bounds = array<i64: 32, 128>}, {transform_indices = @transform_17, window_bounds = array<i64: 1, 8, 128>}]} {
    %c0_i32 = arith.constant 0 : i32
    %0 = arith.cmpi eq, %arg1, %c0_i32 : i32
    %1 = arith.extui %0 : i1 to i32
    %c0_i32_0 = arith.constant 0 : i32
    %2 = arith.cmpi ne, %1, %c0_i32_0 : i32
    scf.if %2 {
      %c0_72 = arith.constant 0 : index
      %c0_73 = arith.constant 0 : index
      %c0_74 = arith.constant 0 : index
      %133 = vector.load %arg2[%c0_72, %c0_73, %c0_74] : memref<1x8x32xf32, #tpu.memory_space<vmem>>, vector<1x8x32xf32>
      %134 = vector.shape_cast %133 : vector<1x8x32xf32> to vector<8x32xf32>
      %c0_75 = arith.constant 0 : index
      %c0_76 = arith.constant 0 : index
      %135 = vector.load %arg20[%c0_75, %c0_76] : memref<8x32xf32, #tpu.memory_space<vmem>>, vector<8x32xf32>
      tpu.vector_store %arg20[%c0_75, %c0_76], %134 {strides = array<i32>} : memref<8x32xf32, #tpu.memory_space<vmem>>, vector<8x32xf32>,
    } else {
    }
    %c0 = arith.constant 0 : index
    %c0_1 = arith.constant 0 : index
    %3 = vector.load %arg20[%c0, %c0_1] : memref<8x32xf32, #tpu.memory_space<vmem>>, vector<8x32xf32>
    %c0_2 = arith.constant 0 : index
    %c0_3 = arith.constant 0 : index
    %c0_4 = arith.constant 0 : index
    %4 = vector.load %arg3[%c0_2, %c0_3, %c0_4] : memref<1x1x32xf32, #tpu.memory_space<vmem>>, vector<1x1x32xf32>
    %5 = vector.shape_cast %4 : vector<1x1x32xf32> to vector<1x32xf32>
    %c0_5 = arith.constant 0 : index
    %c0_6 = arith.constant 0 : index
    %c0_7 = arith.constant 0 : index
    %6 = vector.load %arg4[%c0_5, %c0_6, %c0_7] : memref<1x1x32xf32, #tpu.memory_space<vmem>>, vector<1x1x32xf32>
    %7 = vector.shape_cast %6 : vector<1x1x32xf32> to vector<1x32xf32>
    %cst = arith.constant dense<0.000000e+00> : vector<8xf32>
    %8 = vector.multi_reduction <add>, %3, %cst [1] : vector<8x32xf32> to vector<8xf32>
    %9 = vector.shape_cast %8 : vector<8xf32> to vector<8x1xf32>
    %cst_8 = arith.constant 3.200000e+01 : f32
    %10 = vector.broadcast %cst_8 : f32 to vector<8x1xf32>
    %11 = arith.divf %9, %10 : vector<8x1xf32>
    %12 = vector.broadcast %11 : vector<8x1xf32> to vector<8x32xf32>
    %13 = arith.subf %3, %12 : vector<8x32xf32>
    %14 = arith.mulf %13, %13 : vector<8x32xf32>
    %cst_9 = arith.constant dense<0.000000e+00> : vector<8xf32>
    %15 = vector.multi_reduction <add>, %14, %cst_9 [1] : vector<8x32xf32> to vector<8xf32>
    %16 = vector.shape_cast %15 : vector<8xf32> to vector<8x1xf32>
    %cst_10 = arith.constant 3.200000e+01 : f32
    %17 = vector.broadcast %cst_10 : f32 to vector<8x1xf32>
    %18 = arith.divf %16, %17 : vector<8x1xf32>
    %19 = vector.broadcast %11 : vector<8x1xf32> to vector<8x32xf32>
    %20 = arith.subf %3, %19 : vector<8x32xf32>
    %cst_11 = arith.constant 9.99999974E-6 : f32
    %21 = vector.broadcast %cst_11 : f32 to vector<8x1xf32>
    %22 = arith.addf %18, %21 : vector<8x1xf32>
    %23 = math.rsqrt %22 : vector<8x1xf32>
    %24 = vector.broadcast %23 : vector<8x1xf32> to vector<8x32xf32>
    %25 = arith.mulf %20, %24 : vector<8x32xf32>
    %26 = vector.broadcast %5 : vector<1x32xf32> to vector<8x32xf32>
    %27 = arith.mulf %25, %26 : vector<8x32xf32>
    %28 = vector.broadcast %7 : vector<1x32xf32> to vector<8x32xf32>
    %29 = arith.addf %27, %28 : vector<8x32xf32>
    %30 = arith.truncf %29 : vector<8x32xf32> to vector<8x32xbf16>
    %31 = vector.shape_cast %30 : vector<8x32xbf16> to vector<1x8x32xbf16>
    %32 = vector.shape_cast %31 : vector<1x8x32xbf16> to vector<1x8x32xbf16>
    %33 = vector.broadcast %32 : vector<1x8x32xbf16> to vector<4x8x32xbf16>
    %c0_12 = arith.constant 0 : index
    %c0_13 = arith.constant 0 : index
    %c0_14 = arith.constant 0 : index
    %c0_15 = arith.constant 0 : index
    %34 = vector.load %arg5[%c0_12, %c0_13, %c0_14, %c0_15] : memref<1x4x32x8xbf16, #tpu.memory_space<vmem>>, vector<1x4x32x8xbf16>
    %35 = vector.shape_cast %34 : vector<1x4x32x8xbf16> to vector<4x32x8xbf16>
    "tpu.trace_start"() <{level = 10 : i32, message = "hnd,hde->hne"}> : () -> ()
    %cst_16 = arith.constant dense<0.000000e+00> : vector<4x8x8xf32>
    %36 = tpu.matmul %33, %35, %cst_16 {dimension_numbers = #tpu.dot_dimension_numbers<[2], [1], [1], [2], [0, 0, 0, 1, 1, 2], [0], [0]>} : vector<4x8x32xbf16>, vector<4x32x8xbf16>, vector<4x8x8xf32> -> vector<4x8x8xf32>
    "tpu.trace_stop"() : () -> ()
    %c0_17 = arith.constant 0 : index
    %c0_18 = arith.constant 0 : index
    %c0_19 = arith.constant 0 : index
    %c0_20 = arith.constant 0 : index
    %37 = vector.load %arg6[%c0_17, %c0_18, %c0_19, %c0_20] : memref<1x4x8x8xbf16, #tpu.memory_space<vmem>>, vector<1x4x8x8xbf16>
    %38 = vector.shape_cast %37 : vector<1x4x8x8xbf16> to vector<4x8x8xbf16>
    %39 = arith.truncf %36 : vector<4x8x8xf32> to vector<4x8x8xbf16>
    "tpu.trace_start"() <{level = 10 : i32, message = "hij,hjd->hid"}> : () -> ()
    %cst_21 = arith.constant dense<0.000000e+00> : vector<4x8x8xf32>
    %40 = tpu.matmul %38, %39, %cst_21 {dimension_numbers = #tpu.dot_dimension_numbers<[2], [1], [1], [2], [0, 0, 0, 1, 1, 2], [0], [0]>} : vector<4x8x8xbf16>, vector<4x8x8xbf16>, vector<4x8x8xf32> -> vector<4x8x8xf32>
    "tpu.trace_stop"() : () -> ()
    %41 = arith.truncf %40 : vector<4x8x8xf32> to vector<4x8x8xbf16>
    %c0_22 = arith.constant 0 : index
    %c0_23 = arith.constant 0 : index
    %c0_24 = arith.constant 0 : index
    %c0_25 = arith.constant 0 : index
    %42 = vector.load %arg7[%c0_22, %c0_23, %c0_24, %c0_25] : memref<1x4x8x32xbf16, #tpu.memory_space<vmem>>, vector<1x4x8x32xbf16>
    %43 = vector.shape_cast %42 : vector<1x4x8x32xbf16> to vector<4x8x32xbf16>
    "tpu.trace_start"() <{level = 10 : i32, message = "hnd,hde->hne"}> : () -> ()
    %cst_26 = arith.constant dense<0.000000e+00> : vector<4x8x32xf32>
    %44 = tpu.matmul %41, %43, %cst_26 {dimension_numbers = #tpu.dot_dimension_numbers<[2], [1], [1], [2], [0, 0, 0, 1, 1, 2], [0], [0]>} : vector<4x8x8xbf16>, vector<4x8x32xbf16>, vector<4x8x32xf32> -> vector<4x8x32xf32>
    "tpu.trace_stop"() : () -> ()
    %cst_27 = arith.constant dense<0.000000e+00> : vector<8x32xf32>
    %45 = vector.multi_reduction <add>, %44, %cst_27 [0] : vector<4x8x32xf32> to vector<8x32xf32>
    %46 = arith.addf %3, %45 : vector<8x32xf32>
    %c0_28 = arith.constant 0 : index
    %c0_29 = arith.constant 0 : index
    %c0_30 = arith.constant 0 : index
    %47 = vector.load %arg8[%c0_28, %c0_29, %c0_30] : memref<1x1x32xf32, #tpu.memory_space<vmem>>, vector<1x1x32xf32>
    %48 = vector.shape_cast %47 : vector<1x1x32xf32> to vector<1x32xf32>
    %c0_31 = arith.constant 0 : index
    %c0_32 = arith.constant 0 : index
    %c0_33 = arith.constant 0 : index
    %49 = vector.load %arg9[%c0_31, %c0_32, %c0_33] : memref<1x1x32xf32, #tpu.memory_space<vmem>>, vector<1x1x32xf32>
    %50 = vector.shape_cast %49 : vector<1x1x32xf32> to vector<1x32xf32>
    %cst_34 = arith.constant dense<0.000000e+00> : vector<8xf32>
    %51 = vector.multi_reduction <add>, %46, %cst_34 [1] : vector<8x32xf32> to vector<8xf32>
    %52 = vector.shape_cast %51 : vector<8xf32> to vector<8x1xf32>
    %cst_35 = arith.constant 3.200000e+01 : f32
    %53 = vector.broadcast %cst_35 : f32 to vector<8x1xf32>
    %54 = arith.divf %52, %53 : vector<8x1xf32>
    %55 = vector.broadcast %54 : vector<8x1xf32> to vector<8x32xf32>
    %56 = arith.subf %46, %55 : vector<8x32xf32>
    %57 = arith.mulf %56, %56 : vector<8x32xf32>
    %cst_36 = arith.constant dense<0.000000e+00> : vector<8xf32>
    %58 = vector.multi_reduction <add>, %57, %cst_36 [1] : vector<8x32xf32> to vector<8xf32>
    %59 = vector.shape_cast %58 : vector<8xf32> to vector<8x1xf32>
    %cst_37 = arith.constant 3.200000e+01 : f32
    %60 = vector.broadcast %cst_37 : f32 to vector<8x1xf32>
    %61 = arith.divf %59, %60 : vector<8x1xf32>
    %62 = vector.broadcast %54 : vector<8x1xf32> to vector<8x32xf32>
    %63 = arith.subf %46, %62 : vector<8x32xf32>
    %cst_38 = arith.constant 9.99999974E-6 : f32
    %64 = vector.broadcast %cst_38 : f32 to vector<8x1xf32>
    %65 = arith.addf %61, %64 : vector<8x1xf32>
    %66 = math.rsqrt %65 : vector<8x1xf32>
    %67 = vector.broadcast %66 : vector<8x1xf32> to vector<8x32xf32>
    %68 = arith.mulf %63, %67 : vector<8x32xf32>
    %69 = vector.broadcast %48 : vector<1x32xf32> to vector<8x32xf32>
    %70 = arith.mulf %68, %69 : vector<8x32xf32>
    %71 = vector.broadcast %50 : vector<1x32xf32> to vector<8x32xf32>
    %72 = arith.addf %70, %71 : vector<8x32xf32>
    %73 = arith.truncf %72 : vector<8x32xf32> to vector<8x32xbf16>
    %c0_39 = arith.constant 0 : index
    %c0_40 = arith.constant 0 : index
    %74 = vector.load %arg10[%c0_39, %c0_40] : memref<8x8xbf16, #tpu.memory_space<vmem>>, vector<8x8xbf16>
    %cst_41 = arith.constant dense<0.000000e+00> : vector<8x32xf32>
    %75 = tpu.matmul %74, %73, %cst_41 {dimension_numbers = #tpu.dot_dimension_numbers<[1], [0], [0], [1], [0, 0, 1, 1], [], []>} : vector<8x8xbf16>, vector<8x32xbf16>, vector<8x32xf32> -> vector<8x32xf32>
    %76 = arith.truncf %75 : vector<8x32xf32> to vector<8x32xbf16>
    %c0_42 = arith.constant 0 : index
    %c0_43 = arith.constant 0 : index
    %c0_44 = arith.constant 0 : index
    %77 = vector.load %arg11[%c0_42, %c0_43, %c0_44] : memref<1x32x32xbf16, #tpu.memory_space<vmem>>, vector<1x32x32xbf16>
    %78 = vector.shape_cast %77 : vector<1x32x32xbf16> to vector<32x32xbf16>
    %cst_45 = arith.constant dense<0.000000e+00> : vector<8x32xf32>
    %79 = tpu.matmul %76, %78, %cst_45 {dimension_numbers = #tpu.dot_dimension_numbers<[1], [0], [0], [1], [0, 0, 1, 1], [], []>} : vector<8x32xbf16>, vector<32x32xbf16>, vector<8x32xf32> -> vector<8x32xf32>
    %80 = arith.addf %46, %79 : vector<8x32xf32>
    %c0_46 = arith.constant 0 : index
    %c0_47 = arith.constant 0 : index
    %c0_48 = arith.constant 0 : index
    %81 = vector.load %arg12[%c0_46, %c0_47, %c0_48] : memref<1x1x32xf32, #tpu.memory_space<vmem>>, vector<1x1x32xf32>
    %82 = vector.shape_cast %81 : vector<1x1x32xf32> to vector<1x32xf32>
    %c0_49 = arith.constant 0 : index
    %c0_50 = arith.constant 0 : index
    %c0_51 = arith.constant 0 : index
    %83 = vector.load %arg13[%c0_49, %c0_50, %c0_51] : memref<1x1x32xf32, #tpu.memory_space<vmem>>, vector<1x1x32xf32>
    %84 = vector.shape_cast %83 : vector<1x1x32xf32> to vector<1x32xf32>
    %cst_52 = arith.constant dense<0.000000e+00> : vector<8xf32>
    %85 = vector.multi_reduction <add>, %80, %cst_52 [1] : vector<8x32xf32> to vector<8xf32>
    %86 = vector.shape_cast %85 : vector<8xf32> to vector<8x1xf32>
    %cst_53 = arith.constant 3.200000e+01 : f32
    %87 = vector.broadcast %cst_53 : f32 to vector<8x1xf32>
    %88 = arith.divf %86, %87 : vector<8x1xf32>
    %89 = vector.broadcast %88 : vector<8x1xf32> to vector<8x32xf32>
    %90 = arith.subf %80, %89 : vector<8x32xf32>
    %91 = arith.mulf %90, %90 : vector<8x32xf32>
    %cst_54 = arith.constant dense<0.000000e+00> : vector<8xf32>
    %92 = vector.multi_reduction <add>, %91, %cst_54 [1] : vector<8x32xf32> to vector<8xf32>
    %93 = vector.shape_cast %92 : vector<8xf32> to vector<8x1xf32>
    %cst_55 = arith.constant 3.200000e+01 : f32
    %94 = vector.broadcast %cst_55 : f32 to vector<8x1xf32>
    %95 = arith.divf %93, %94 : vector<8x1xf32>
    %96 = vector.broadcast %88 : vector<8x1xf32> to vector<8x32xf32>
    %97 = arith.subf %80, %96 : vector<8x32xf32>
    %cst_56 = arith.constant 9.99999974E-6 : f32
    %98 = vector.broadcast %cst_56 : f32 to vector<8x1xf32>
    %99 = arith.addf %95, %98 : vector<8x1xf32>
    %100 = math.rsqrt %99 : vector<8x1xf32>
    %101 = vector.broadcast %100 : vector<8x1xf32> to vector<8x32xf32>
    %102 = arith.mulf %97, %101 : vector<8x32xf32>
    %103 = vector.broadcast %82 : vector<1x32xf32> to vector<8x32xf32>
    %104 = arith.mulf %102, %103 : vector<8x32xf32>
    %105 = vector.broadcast %84 : vector<1x32xf32> to vector<8x32xf32>
    %106 = arith.addf %104, %105 : vector<8x32xf32>
    %107 = arith.truncf %106 : vector<8x32xf32> to vector<8x32xbf16>
    %c0_57 = arith.constant 0 : index
    %c0_58 = arith.constant 0 : index
    %c0_59 = arith.constant 0 : index
    %108 = vector.load %arg14[%c0_57, %c0_58, %c0_59] : memref<1x32x128xbf16, #tpu.memory_space<vmem>>, vector<1x32x128xbf16>
    %109 = vector.shape_cast %108 : vector<1x32x128xbf16> to vector<32x128xbf16>
    %cst_60 = arith.constant dense<0.000000e+00> : vector<8x128xf32>
    %110 = tpu.matmul %107, %109, %cst_60 {dimension_numbers = #tpu.dot_dimension_numbers<[1], [0], [0], [1], [0, 0, 1, 1], [], []>} : vector<8x32xbf16>, vector<32x128xbf16>, vector<8x128xf32> -> vector<8x128xf32>
    %cst_61 = arith.constant 5.000000e-01 : f32
    %111 = vector.broadcast %cst_61 : f32 to vector<8x128xf32>
    %112 = arith.mulf %111, %110 : vector<8x128xf32>
    %cst_62 = arith.constant 4.471500e-02 : f32
    %113 = vector.broadcast %cst_62 : f32 to vector<8x128xf32>
    %114 = arith.mulf %113, %110 : vector<8x128xf32>
    %115 = arith.mulf %114, %110 : vector<8x128xf32>
    %116 = arith.mulf %115, %110 : vector<8x128xf32>
    %117 = arith.addf %110, %116 : vector<8x128xf32>
    %cst_63 = arith.constant 0.797884583 : f32
    %118 = vector.broadcast %cst_63 : f32 to vector<8x128xf32>
    %119 = arith.mulf %118, %117 : vector<8x128xf32>
    %120 = math.tanh %119 : vector<8x128xf32>
    %cst_64 = arith.constant 1.000000e+00 : f32
    %121 = vector.broadcast %cst_64 : f32 to vector<8x128xf32>
    %122 = arith.addf %121, %120 : vector<8x128xf32>
    %123 = arith.mulf %112, %122 : vector<8x128xf32>
    %124 = arith.truncf %123 : vector<8x128xf32> to vector<8x128xbf16>
    %c0_65 = arith.constant 0 : index
    %c0_66 = arith.constant 0 : index
    %c0_67 = arith.constant 0 : index
    %125 = vector.load %arg15[%c0_65, %c0_66, %c0_67] : memref<1x128x32xbf16, #tpu.memory_space<vmem>>, vector<1x128x32xbf16>
    %126 = vector.shape_cast %125 : vector<1x128x32xbf16> to vector<128x32xbf16>
    %cst_68 = arith.constant dense<0.000000e+00> : vector<8x32xf32>
    %127 = tpu.matmul %124, %126, %cst_68 {dimension_numbers = #tpu.dot_dimension_numbers<[1], [0], [0], [1], [0, 0, 1, 1], [], []>} : vector<8x128xbf16>, vector<128x32xbf16>, vector<8x32xf32> -> vector<8x32xf32>
    %128 = arith.addf %80, %127 : vector<8x32xf32>
    %c0_69 = arith.constant 0 : index
    %c0_70 = arith.constant 0 : index
    %129 = vector.load %arg20[%c0_69, %c0_70] : memref<8x32xf32, #tpu.memory_space<vmem>>, vector<8x32xf32>
    tpu.vector_store %arg20[%c0_69, %c0_70], %128 {strides = array<i32>} : memref<8x32xf32, #tpu.memory_space<vmem>>, vector<8x32xf32>,
    %c1_i32 = arith.constant 1 : i32
    %130 = arith.cmpi eq, %arg1, %c1_i32 : i32
    %131 = arith.extui %130 : i1 to i32
    %c0_i32_71 = arith.constant 0 : i32
    %132 = arith.cmpi ne, %131, %c0_i32_71 : i32
    scf.if %132 {
      %c0_72 = arith.constant 0 : index
      %c0_73 = arith.constant 0 : index
      %133 = vector.load %arg16[%c0_72, %c0_73] : memref<1x32xf32, #tpu.memory_space<vmem>>, vector<1x32xf32>
      %c0_74 = arith.constant 0 : index
      %c0_75 = arith.constant 0 : index
      %134 = vector.load %arg17[%c0_74, %c0_75] : memref<1x32xf32, #tpu.memory_space<vmem>>, vector<1x32xf32>
      %cst_76 = arith.constant dense<0.000000e+00> : vector<8xf32>
      %135 = vector.multi_reduction <add>, %128, %cst_76 [1] : vector<8x32xf32> to vector<8xf32>
      %136 = vector.shape_cast %135 : vector<8xf32> to vector<8x1xf32>
      %cst_77 = arith.constant 3.200000e+01 : f32
      %137 = vector.broadcast %cst_77 : f32 to vector<8x1xf32>
      %138 = arith.divf %136, %137 : vector<8x1xf32>
      %139 = vector.broadcast %138 : vector<8x1xf32> to vector<8x32xf32>
      %140 = arith.subf %128, %139 : vector<8x32xf32>
      %141 = arith.mulf %140, %140 : vector<8x32xf32>
      %cst_78 = arith.constant dense<0.000000e+00> : vector<8xf32>
      %142 = vector.multi_reduction <add>, %141, %cst_78 [1] : vector<8x32xf32> to vector<8xf32>
      %143 = vector.shape_cast %142 : vector<8xf32> to vector<8x1xf32>
      %cst_79 = arith.constant 3.200000e+01 : f32
      %144 = vector.broadcast %cst_79 : f32 to vector<8x1xf32>
      %145 = arith.divf %143, %144 : vector<8x1xf32>
      %146 = vector.broadcast %138 : vector<8x1xf32> to vector<8x32xf32>
      %147 = arith.subf %128, %146 : vector<8x32xf32>
      %cst_80 = arith.constant 9.99999974E-6 : f32
      %148 = vector.broadcast %cst_80 : f32 to vector<8x1xf32>
      %149 = arith.addf %145, %148 : vector<8x1xf32>
      %150 = math.rsqrt %149 : vector<8x1xf32>
      %151 = vector.broadcast %150 : vector<8x1xf32> to vector<8x32xf32>
      %152 = arith.mulf %147, %151 : vector<8x32xf32>
      %153 = vector.broadcast %133 : vector<1x32xf32> to vector<8x32xf32>
      %154 = arith.mulf %152, %153 : vector<8x32xf32>
      %155 = vector.broadcast %134 : vector<1x32xf32> to vector<8x32xf32>
      %156 = arith.addf %154, %155 : vector<8x32xf32>
      %157 = arith.truncf %156 : vector<8x32xf32> to vector<8x32xbf16>
      %c0_81 = arith.constant 0 : index
      %c0_82 = arith.constant 0 : index
      %158 = vector.load %arg18[%c0_81, %c0_82] : memref<32x128xbf16, #tpu.memory_space<vmem>>, vector<32x128xbf16>
      %cst_83 = arith.constant dense<0.000000e+00> : vector<8x128xf32>
      %159 = tpu.matmul %157, %158, %cst_83 {dimension_numbers = #tpu.dot_dimension_numbers<[1], [0], [0], [1], [0, 0, 1, 1], [], []>} : vector<8x32xbf16>, vector<32x128xbf16>, vector<8x128xf32> -> vector<8x128xf32>
      %c0_84 = arith.constant 0 : index
      %c0_85 = arith.constant 0 : index
      %c0_86 = arith.constant 0 : index
      %160 = vector.load %arg19[%c0_84, %c0_85, %c0_86] : memref<1x8x128xf32, #tpu.memory_space<vmem>>, vector<1x8x128xf32>
      %161 = vector.shape_cast %160 : vector<1x8x128xf32> to vector<8x128xf32>
      %162 = vector.shape_cast %159 : vector<8x128xf32> to vector<1x8x128xf32>
      tpu.vector_store %arg19[%c0_84, %c0_85, %c0_86], %162 {strides = array<i32>} : memref<1x8x128xf32, #tpu.memory_space<vmem>>, vector<1x8x128xf32>,
    } else {
    }
    return
  }
  func.func @transform_0(%arg0: i32, %arg1: i32) -> (i32, i32, i32) {
    %c0_i32 = arith.constant 0 : i32
    %c0_i32_0 = arith.constant 0 : i32
    %c0_i32_1 = arith.constant 0 : i32
    return %arg0, %c0_i32, %c0_i32_0 : i32, i32, i32
  }
  func.func @transform_1(%arg0: i32, %arg1: i32) -> (i32, i32, i32) {
    %c0_i32 = arith.constant 0 : i32
    %c0_i32_0 = arith.constant 0 : i32
    %c0_i32_1 = arith.constant 0 : i32
    return %arg1, %c0_i32, %c0_i32_0 : i32, i32, i32
  }
  func.func @transform_2(%arg0: i32, %arg1: i32) -> (i32, i32, i32) {
    %c0_i32 = arith.constant 0 : i32
    %c0_i32_0 = arith.constant 0 : i32
    %c0_i32_1 = arith.constant 0 : i32
    return %arg1, %c0_i32, %c0_i32_0 : i32, i32, i32
  }
  func.func @transform_3(%arg0: i32, %arg1: i32) -> (i32, i32, i32, i32) {
    %c0_i32 = arith.constant 0 : i32
    %c0_i32_0 = arith.constant 0 : i32
    %c0_i32_1 = arith.constant 0 : i32
    %c0_i32_2 = arith.constant 0 : i32
    return %arg1, %c0_i32, %c0_i32_0, %c0_i32_1 : i32, i32, i32, i32
  }
  func.func @transform_4(%arg0: i32, %arg1: i32) -> (i32, i32, i32, i32) {
    %c0_i32 = arith.constant 0 : i32
    %c0_i32_0 = arith.constant 0 : i32
    %c0_i32_1 = arith.constant 0 : i32
    %c0_i32_2 = arith.constant 0 : i32
    return %arg1, %c0_i32, %c0_i32_0, %c0_i32_1 : i32, i32, i32, i32
  }
  func.func @transform_5(%arg0: i32, %arg1: i32) -> (i32, i32, i32, i32) {
    %c0_i32 = arith.constant 0 : i32
    %c0_i32_0 = arith.constant 0 : i32
    %c0_i32_1 = arith.constant 0 : i32
    %c0_i32_2 = arith.constant 0 : i32
    return %arg1, %c0_i32, %c0_i32_0, %c0_i32_1 : i32, i32, i32, i32
  }
  func.func @transform_6(%arg0: i32, %arg1: i32) -> (i32, i32, i32) {
    %c0_i32 = arith.constant 0 : i32
    %c0_i32_0 = arith.constant 0 : i32
    %c0_i32_1 = arith.constant 0 : i32
    return %arg1, %c0_i32, %c0_i32_0 : i32, i32, i32
  }
  func.func @transform_7(%arg0: i32, %arg1: i32) -> (i32, i32, i32) {
    %c0_i32 = arith.constant 0 : i32
    %c0_i32_0 = arith.constant 0 : i32
    %c0_i32_1 = arith.constant 0 : i32
    return %arg1, %c0_i32, %c0_i32_0 : i32, i32, i32
  }
  func.func @transform_8(%arg0: i32, %arg1: i32) -> (i32, i32) {
    %c0_i32 = arith.constant 0 : i32
    %c0_i32_0 = arith.constant 0 : i32
    %c0_i32_1 = arith.constant 0 : i32
    return %c0_i32, %c0_i32_0 : i32, i32
  }
  func.func @transform_9(%arg0: i32, %arg1: i32) -> (i32, i32, i32) {
    %c0_i32 = arith.constant 0 : i32
    %c0_i32_0 = arith.constant 0 : i32
    %c0_i32_1 = arith.constant 0 : i32
    return %arg1, %c0_i32, %c0_i32_0 : i32, i32, i32
  }
  func.func @transform_10(%arg0: i32, %arg1: i32) -> (i32, i32, i32) {
    %c0_i32 = arith.constant 0 : i32
    %c0_i32_0 = arith.constant 0 : i32
    %c0_i32_1 = arith.constant 0 : i32
    return %arg1, %c0_i32, %c0_i32_0 : i32, i32, i32
  }
  func.func @transform_11(%arg0: i32, %arg1: i32) -> (i32, i32, i32) {
    %c0_i32 = arith.constant 0 : i32
    %c0_i32_0 = arith.constant 0 : i32
    %c0_i32_1 = arith.constant 0 : i32
    return %arg1, %c0_i32, %c0_i32_0 : i32, i32, i32
  }
  func.func @transform_12(%arg0: i32, %arg1: i32) -> (i32, i32, i32) {
    %c0_i32 = arith.constant 0 : i32
    %c0_i32_0 = arith.constant 0 : i32
    %c0_i32_1 = arith.constant 0 : i32
    return %arg1, %c0_i32, %c0_i32_0 : i32, i32, i32
  }
  func.func @transform_13(%arg0: i32, %arg1: i32) -> (i32, i32, i32) {
    %c0_i32 = arith.constant 0 : i32
    %c0_i32_0 = arith.constant 0 : i32
    %c0_i32_1 = arith.constant 0 : i32
    return %arg1, %c0_i32, %c0_i32_0 : i32, i32, i32
  }
  func.func @transform_14(%arg0: i32, %arg1: i32) -> (i32, i32) {
    %c0_i32 = arith.constant 0 : i32
    %c0_i32_0 = arith.constant 0 : i32
    %c0_i32_1 = arith.constant 0 : i32
    return %c0_i32, %c0_i32_0 : i32, i32
  }
  func.func @transform_15(%arg0: i32, %arg1: i32) -> (i32, i32) {
    %c0_i32 = arith.constant 0 : i32
    %c0_i32_0 = arith.constant 0 : i32
    %c0_i32_1 = arith.constant 0 : i32
    return %c0_i32, %c0_i32_0 : i32, i32
  }
  func.func @transform_16(%arg0: i32, %arg1: i32) -> (i32, i32) {
    %c0_i32 = arith.constant 0 : i32
    %c0_i32_0 = arith.constant 0 : i32
    %c0_i32_1 = arith.constant 0 : i32
    return %c0_i32, %c0_i32_0 : i32, i32
  }
  func.func @transform_17(%arg0: i32, %arg1: i32) -> (i32, i32, i32) {
    %c0_i32 = arith.constant 0 : i32
    %c0_i32_0 = arith.constant 0 : i32
    %c0_i32_1 = arith.constant 0 : i32
    return %arg0, %c0_i32, %c0_i32_0 : i32, i32, i32
  }
}

</mosaic_0001>

<llo_original>
// kernel: metaformer_forward.1
$region0: #{metaformer_forward.1}
  #allocation0 [shape = 'u32[]', space=smem, size = 0x4, offset = 0x4, fixed_abs, tag = 'smem constant byte address 0x4 - core index']
  #allocation1 [shape = 'u32[144,128]{1,0:T(1,128)}', space=vmem, size = 0x12000, scoped, tag = 'internal scratch']
  #allocation2 [shape = 'f32[8,32]{1,0:T(8,128)}', space=vmem, size = 0x1000, scoped, tag = 'scratch operand']
  %s0 = inlined_call_operand.vmem [shape: f32[2,8,32], index: 0, kind: input, shape index: {}]
  %s1 = inlined_call_operand.vmem [shape: f32[2,1,32], index: 1, kind: input, shape index: {}]
  %s2 = inlined_call_operand.vmem [shape: f32[2,1,32], index: 2, kind: input, shape index: {}]
  %s3 = inlined_call_operand.vmem [shape: bf16[2,4,32,8], index: 3, kind: input, shape index: {}]
  %s4 = inlined_call_operand.vmem [shape: bf16[2,4,8,8], index: 4, kind: input, shape index: {}]
  %s5 = inlined_call_operand.vmem [shape: bf16[2,4,8,32], index: 5, kind: input, shape index: {}]
  %s6 = inlined_call_operand.vmem [shape: f32[2,1,32], index: 6, kind: input, shape index: {}]
  %s7 = inlined_call_operand.vmem [shape: f32[2,1,32], index: 7, kind: input, shape index: {}]
  %s8 = inlined_call_operand.vmem [shape: bf16[8,8], index: 8, kind: input, shape index: {}]
  %s9 = inlined_call_operand.vmem [shape: bf16[2,32,32], index: 9, kind: input, shape index: {}]
  %s10 = inlined_call_operand.vmem [shape: f32[2,1,32], index: 10, kind: input, shape index: {}]
  %s11 = inlined_call_operand.vmem [shape: f32[2,1,32], index: 11, kind: input, shape index: {}]
  %s12 = inlined_call_operand.vmem [shape: bf16[2,32,128], index: 12, kind: input, shape index: {}]
  %s13 = inlined_call_operand.vmem [shape: bf16[2,128,32], index: 13, kind: input, shape index: {}]
  %s14 = inlined_call_operand.vmem [shape: f32[1,32], index: 14, kind: input, shape index: {}]
  %s15 = inlined_call_operand.vmem [shape: f32[1,32], index: 15, kind: input, shape index: {}]
  %s16 = inlined_call_operand.vmem [shape: bf16[32,128], index: 16, kind: input, shape index: {}]
  %s17 = inlined_call_operand.hbm [shape: f32[2,8,128], index: 17, kind: output, shape index: {}]
  %s18 = sld [smem:[#allocation0]]
  $region109: #{metaformer_forward.1} parent=0
    _
  %s20 = ssub.s32 1, %s18
  %s21 = scalar_select 0, %s20, %s18
  $region1: #{metaformer_forward.1} parent=0
    #allocation3 [shape = 'u8[8192]{0}', space=vmem, size = 0x2000, scoped, tag = 'output window, operand 0']
    #allocation4 [shape = 's32[2]{0}', space=sflag, size = 0x8, scoped, tag = 'scoped memory for metaformer_forward.1']
    %22 = vsyncpa [#allocation4], 0
    %s23 = scalar_lea.sflag [#allocation4], 1
    %24 = vsyncpa %s23, 0
    loop: start=0, step=1, limit=6
    $region2: #{metaformer_forward.1} parent=1 // loop_pre_header
      _
    $region3: #{metaformer_forward.1} parent=1 // loop_header
      %s26 = sphi 0, %s30
      %p27 = scmp.ge.s32.totalorder %s26, 6
      %s33 = sphi 0, %s45
      %s34 = sphi 0, %s41
      %s35 = sphi 0, %s33
      %s36 = sphi 0, %s34
      %s37 = sphi 0, %s35
      %s38 = sphi 0, %s36
      %s48 = sphi 0, %s50
      %s51 = sphi 0, %s48
      %s52 = sphi 0, %s51
      %s68 = sphi 0, %s52
      %s74 = sphi 0, %s76
      %s77 = sphi 0, %s74
      %s78 = sphi 0, %s77
      %s94 = sphi 0, %s78
      %s100 = sphi 0, %s102
      %s103 = sphi 0, %s100
      %s104 = sphi 0, %s103
      %s120 = sphi 0, %s104
      %s126 = sphi 0, %s128
      %s129 = sphi 0, %s126
      %s130 = sphi 0, %s129
      %s146 = sphi 0, %s130
      %s152 = sphi 0, %s154
      %s155 = sphi 0, %s152
      %s156 = sphi 0, %s155
      %s172 = sphi 0, %s156
      %s178 = sphi 0, %s180
      %s181 = sphi 0, %s178
      %s182 = sphi 0, %s181
      %s198 = sphi 0, %s182
      %s204 = sphi 0, %s206
      %s207 = sphi 0, %s204
      %s208 = sphi 0, %s207
      %s224 = sphi 0, %s208
      %s230 = sphi 0, %s232
      %s233 = sphi 0, %s230
      %s234 = sphi 0, %s233
      %s250 = sphi 0, %s234
      %s254 = sphi 0, %s254
      %s256 = sphi 0, %s254
      %s257 = sphi 0, %s256
      %s271 = sphi 0, %s257
      %s277 = sphi 0, %s279
      %s280 = sphi 0, %s277
      %s281 = sphi 0, %s280
      %s297 = sphi 0, %s281
      %s303 = sphi 0, %s305
      %s306 = sphi 0, %s303
      %s307 = sphi 0, %s306
      %s323 = sphi 0, %s307
      %s329 = sphi 0, %s331
      %s332 = sphi 0, %s329
      %s333 = sphi 0, %s332
      %s349 = sphi 0, %s333
      %s355 = sphi 0, %s357
      %s358 = sphi 0, %s355
      %s359 = sphi 0, %s358
      %s375 = sphi 0, %s359
      %s381 = sphi 0, %s383
      %s384 = sphi 0, %s381
      %s385 = sphi 0, %s384
      %s401 = sphi 0, %s385
      %s405 = sphi 0, %s405
      %s407 = sphi 0, %s405
      %s408 = sphi 0, %s407
      %s422 = sphi 0, %s408
      %s426 = sphi 0, %s426
      %s428 = sphi 0, %s426
      %s429 = sphi 0, %s428
      %s443 = sphi 0, %s429
      %s447 = sphi 0, %s447
      %s449 = sphi 0, %s447
      %s450 = sphi 0, %s449
      %s464 = sphi 0, %s450
      %s470 = sphi 0, %s472
      %s473 = sphi 0, %s470
      %s474 = sphi 0, %s473
      %s490 = sphi 0, %s474
    $region4: #{metaformer_forward.1} parent=1 // loop_header_branch
      %29 = sbr.rel (%p27) target = $region8
    $region5: #{metaformer_forward.1} parent=1 // loop_body
      %s31 = ssub.s32 %s26, 1
      %s32 = ssub.s32 %s26, 2
      %s39 = sadd.s32 1, %s34
      %p40 = scmp.ge.s32.totalorder %s39, 2
      %s41 = scalar_select %p40, 0, %s39
      %s42 = sadd.s32 1, %s33
      %s43 = scalar_select %p40, %s42, %s33
      %p44 = scmp.ge.s32.totalorder %s43, 2
      %s45 = scalar_select %p44, 0, %s43
      %s46 = ssub.s32 %s33, %s45
      %p47 = scmp.eq.s32.totalorder %s46, 0
      %s49 = sadd.s32 %s48, 1
      %s50 = scalar_select %p47, %s48, %s49
      %p53 = pneg %p47
      %p54 = scmp.eq.s32.totalorder %s26, 3
      %p55 = por %p53, %p54
      %p56 = scmp.ne.s32.totalorder %s48, %s51
      %p57 = scmp.eq.s32.totalorder %s26, 0
      %p58 = por %p56, %p57
      %p59 = scmp.ne.s32.totalorder %s48, %s51
      %p60 = scmp.eq.s32.totalorder %s31, 3
      %p61 = por %p59, %p60
      %p62 = scmp.ne.s32.totalorder %s51, %s52
      %p63 = scmp.eq.s32.totalorder %s31, 0
      %p64 = por %p62, %p63
      %p65 = scmp.ne.s32.totalorder %s51, %s52
      %p66 = scmp.eq.s32.totalorder %s32, 3
      %p67 = por %p65, %p66
      %p69 = scmp.ne.s32.totalorder %s52, %s68
      %p70 = scmp.eq.s32.totalorder %s32, 0
      %p71 = por %p69, %p70
      %s72 = ssub.s32 %s34, %s41
      %p73 = scmp.eq.s32.totalorder %s72, 0
      %s75 = sadd.s32 %s74, 1
      %s76 = scalar_select %p73, %s74, %s75
      %p79 = pneg %p73
      %p80 = scmp.eq.s32.totalorder %s26, 3
      %p81 = por %p79, %p80
      %p82 = scmp.ne.s32.totalorder %s74, %s77
      %p83 = scmp.eq.s32.totalorder %s26, 0
      %p84 = por %p82, %p83
      %p85 = scmp.ne.s32.totalorder %s74, %s77
      %p86 = scmp.eq.s32.totalorder %s31, 3
      %p87 = por %p85, %p86
      %p88 = scmp.ne.s32.totalorder %s77, %s78
      %p89 = scmp.eq.s32.totalorder %s31, 0
      %p90 = por %p88, %p89
      %p91 = scmp.ne.s32.totalorder %s77, %s78
      %p92 = scmp.eq.s32.totalorder %s32, 3
      %p93 = por %p91, %p92
      %p95 = scmp.ne.s32.totalorder %s78, %s94
      %p96 = scmp.eq.s32.totalorder %s32, 0
      %p97 = por %p95, %p96
      %s98 = ssub.s32 %s34, %s41
      %p99 = scmp.eq.s32.totalorder %s98, 0
      %s101 = sadd.s32 %s100, 1
      %s102 = scalar_select %p99, %s100, %s101
      %p105 = pneg %p99
      %p106 = scmp.eq.s32.totalorder %s26, 3
      %p107 = por %p105, %p106
      %p108 = scmp.ne.s32.totalorder %s100, %s103
      %p109 = scmp.eq.s32.totalorder %s26, 0
      %p110 = por %p108, %p109
      %p111 = scmp.ne.s32.totalorder %s100, %s103
      %p112 = scmp.eq.s32.totalorder %s31, 3
      %p113 = por %p111, %p112
      %p114 = scmp.ne.s32.totalorder %s103, %s104
      %p115 = scmp.eq.s32.totalorder %s31, 0
      %p116 = por %p114, %p115
      %p117 = scmp.ne.s32.totalorder %s103, %s104
      %p118 = scmp.eq.s32.totalorder %s32, 3
      %p119 = por %p117, %p118
      %p121 = scmp.ne.s32.totalorder %s104, %s120
      %p122 = scmp.eq.s32.totalorder %s32, 0
      %p123 = por %p121, %p122
      %s124 = ssub.s32 %s34, %s41
      %p125 = scmp.eq.s32.totalorder %s124, 0
      %s127 = sadd.s32 %s126, 1
      %s128 = scalar_select %p125, %s126, %s127
      %p131 = pneg %p125
      %p132 = scmp.eq.s32.totalorder %s26, 3
      %p133 = por %p131, %p132
      %p134 = scmp.ne.s32.totalorder %s126, %s129
      %p135 = scmp.eq.s32.totalorder %s26, 0
      %p136 = por %p134, %p135
      %p137 = scmp.ne.s32.totalorder %s126, %s129
      %p138 = scmp.eq.s32.totalorder %s31, 3
      %p139 = por %p137, %p138
      %p140 = scmp.ne.s32.totalorder %s129, %s130
      %p141 = scmp.eq.s32.totalorder %s31, 0
      %p142 = por %p140, %p141
      %p143 = scmp.ne.s32.totalorder %s129, %s130
      %p144 = scmp.eq.s32.totalorder %s32, 3
      %p145 = por %p143, %p144
      %p147 = scmp.ne.s32.totalorder %s130, %s146
      %p148 = scmp.eq.s32.totalorder %s32, 0
      %p149 = por %p147, %p148
      %s150 = ssub.s32 %s34, %s41
      %p151 = scmp.eq.s32.totalorder %s150, 0
      %s153 = sadd.s32 %s152, 1
      %s154 = scalar_select %p151, %s152, %s153
      %p157 = pneg %p151
      %p158 = scmp.eq.s32.totalorder %s26, 3
      %p159 = por %p157, %p158
      %p160 = scmp.ne.s32.totalorder %s152, %s155
      %p161 = scmp.eq.s32.totalorder %s26, 0
      %p162 = por %p160, %p161
      %p163 = scmp.ne.s32.totalorder %s152, %s155
      %p164 = scmp.eq.s32.totalorder %s31, 3
      %p165 = por %p163, %p164
      %p166 = scmp.ne.s32.totalorder %s155, %s156
      %p167 = scmp.eq.s32.totalorder %s31, 0
      %p168 = por %p166, %p167
      %p169 = scmp.ne.s32.totalorder %s155, %s156
      %p170 = scmp.eq.s32.totalorder %s32, 3
      %p171 = por %p169, %p170
      %p173 = scmp.ne.s32.totalorder %s156, %s172
      %p174 = scmp.eq.s32.totalorder %s32, 0
      %p175 = por %p173, %p174
      %s176 = ssub.s32 %s34, %s41
      %p177 = scmp.eq.s32.totalorder %s176, 0
      %s179 = sadd.s32 %s178, 1
      %s180 = scalar_select %p177, %s178, %s179
      %p183 = pneg %p177
      %p184 = scmp.eq.s32.totalorder %s26, 3
      %p185 = por %p183, %p184
      %p186 = scmp.ne.s32.totalorder %s178, %s181
      %p187 = scmp.eq.s32.totalorder %s26, 0
      %p188 = por %p186, %p187
      %p189 = scmp.ne.s32.totalorder %s178, %s181
      %p190 = scmp.eq.s32.totalorder %s31, 3
      %p191 = por %p189, %p190
      %p192 = scmp.ne.s32.totalorder %s181, %s182
      %p193 = scmp.eq.s32.totalorder %s31, 0
      %p194 = por %p192, %p193
      %p195 = scmp.ne.s32.totalorder %s181, %s182
      %p196 = scmp.eq.s32.totalorder %s32, 3
      %p197 = por %p195, %p196
      %p199 = scmp.ne.s32.totalorder %s182, %s198
      %p200 = scmp.eq.s32.totalorder %s32, 0
      %p201 = por %p199, %p200
      %s202 = ssub.s32 %s34, %s41
      %p203 = scmp.eq.s32.totalorder %s202, 0
      %s205 = sadd.s32 %s204, 1
      %s206 = scalar_select %p203, %s204, %s205
      %p209 = pneg %p203
      %p210 = scmp.eq.s32.totalorder %s26, 3
      %p211 = por %p209, %p210
      %p212 = scmp.ne.s32.totalorder %s204, %s207
      %p213 = scmp.eq.s32.totalorder %s26, 0
      %p214 = por %p212, %p213
      %p215 = scmp.ne.s32.totalorder %s204, %s207
      %p216 = scmp.eq.s32.totalorder %s31, 3
      %p217 = por %p215, %p216
      %p218 = scmp.ne.s32.totalorder %s207, %s208
      %p219 = scmp.eq.s32.totalorder %s31, 0
      %p220 = por %p218, %p219
      %p221 = scmp.ne.s32.totalorder %s207, %s208
      %p222 = scmp.eq.s32.totalorder %s32, 3
      %p223 = por %p221, %p222
      %p225 = scmp.ne.s32.totalorder %s208, %s224
      %p226 = scmp.eq.s32.totalorder %s32, 0
      %p227 = por %p225, %p226
      %s228 = ssub.s32 %s34, %s41
      %p229 = scmp.eq.s32.totalorder %s228, 0
      %s231 = sadd.s32 %s230, 1
      %s232 = scalar_select %p229, %s230, %s231
      %p235 = pneg %p229
      %p236 = scmp.eq.s32.totalorder %s26, 3
      %p237 = por %p235, %p236
      %p238 = scmp.ne.s32.totalorder %s230, %s233
      %p239 = scmp.eq.s32.totalorder %s26, 0
      %p240 = por %p238, %p239
      %p241 = scmp.ne.s32.totalorder %s230, %s233
      %p242 = scmp.eq.s32.totalorder %s31, 3
      %p243 = por %p241, %p242
      %p244 = scmp.ne.s32.totalorder %s233, %s234
      %p245 = scmp.eq.s32.totalorder %s31, 0
      %p246 = por %p244, %p245
      %p247 = scmp.ne.s32.totalorder %s233, %s234
      %p248 = scmp.eq.s32.totalorder %s32, 3
      %p249 = por %p247, %p248
      %p251 = scmp.ne.s32.totalorder %s234, %s250
      %p252 = scmp.eq.s32.totalorder %s32, 0
      %p253 = por %p251, %p252
      %s255 = sadd.s32 %s254, 1
      %p258 = scmp.eq.s32.totalorder %s26, 3
      %p259 = scmp.ne.s32.totalorder %s254, %s256
      %p260 = scmp.eq.s32.totalorder %s26, 0
      %p261 = por %p259, %p260
      %p262 = scmp.ne.s32.totalorder %s254, %s256
      %p263 = scmp.eq.s32.totalorder %s31, 3
      %p264 = por %p262, %p263
      %p265 = scmp.ne.s32.totalorder %s256, %s257
      %p266 = scmp.eq.s32.totalorder %s31, 0
      %p267 = por %p265, %p266
      %p268 = scmp.ne.s32.totalorder %s256, %s257
      %p269 = scmp.eq.s32.totalorder %s32, 3
      %p270 = por %p268, %p269
      %p272 = scmp.ne.s32.totalorder %s257, %s271
      %p273 = scmp.eq.s32.totalorder %s32, 0
      %p274 = por %p272, %p273
      %s275 = ssub.s32 %s34, %s41
      %p276 = scmp.eq.s32.totalorder %s275, 0
      %s278 = sadd.s32 %s277, 1
      %s279 = scalar_select %p276, %s277, %s278
      %p282 = pneg %p276
      %p283 = scmp.eq.s32.totalorder %s26, 3
      %p284 = por %p282, %p283
      %p285 = scmp.ne.s32.totalorder %s277, %s280
      %p286 = scmp.eq.s32.totalorder %s26, 0
      %p287 = por %p285, %p286
      %p288 = scmp.ne.s32.totalorder %s277, %s280
      %p289 = scmp.eq.s32.totalorder %s31, 3
      %p290 = por %p288, %p289
      %p291 = scmp.ne.s32.totalorder %s280, %s281
      %p292 = scmp.eq.s32.totalorder %s31, 0
      %p293 = por %p291, %p292
      %p294 = scmp.ne.s32.totalorder %s280, %s281
      %p295 = scmp.eq.s32.totalorder %s32, 3
      %p296 = por %p294, %p295
      %p298 = scmp.ne.s32.totalorder %s281, %s297
      %p299 = scmp.eq.s32.totalorder %s32, 0
      %p300 = por %p298, %p299
      %s301 = ssub.s32 %s34, %s41
      %p302 = scmp.eq.s32.totalorder %s301, 0
      %s304 = sadd.s32 %s303, 1
      %s305 = scalar_select %p302, %s303, %s304
      %p308 = pneg %p302
      %p309 = scmp.eq.s32.totalorder %s26, 3
      %p310 = por %p308, %p309
      %p311 = scmp.ne.s32.totalorder %s303, %s306
      %p312 = scmp.eq.s32.totalorder %s26, 0
      %p313 = por %p311, %p312
      %p314 = scmp.ne.s32.totalorder %s303, %s306
      %p315 = scmp.eq.s32.totalorder %s31, 3
      %p316 = por %p314, %p315
      %p317 = scmp.ne.s32.totalorder %s306, %s307
      %p318 = scmp.eq.s32.totalorder %s31, 0
      %p319 = por %p317, %p318
      %p320 = scmp.ne.s32.totalorder %s306, %s307
      %p321 = scmp.eq.s32.totalorder %s32, 3
      %p322 = por %p320, %p321
      %p324 = scmp.ne.s32.totalorder %s307, %s323
      %p325 = scmp.eq.s32.totalorder %s32, 0
      %p326 = por %p324, %p325
      %s327 = ssub.s32 %s34, %s41
      %p328 = scmp.eq.s32.totalorder %s327, 0
      %s330 = sadd.s32 %s329, 1
      %s331 = scalar_select %p328, %s329, %s330
      %p334 = pneg %p328
      %p335 = scmp.eq.s32.totalorder %s26, 3
      %p336 = por %p334, %p335
      %p337 = scmp.ne.s32.totalorder %s329, %s332
      %p338 = scmp.eq.s32.totalorder %s26, 0
      %p339 = por %p337, %p338
      %p340 = scmp.ne.s32.totalorder %s329, %s332
      %p341 = scmp.eq.s32.totalorder %s31, 3
      %p342 = por %p340, %p341
      %p343 = scmp.ne.s32.totalorder %s332, %s333
      %p344 = scmp.eq.s32.totalorder %s31, 0
      %p345 = por %p343, %p344
      %p346 = scmp.ne.s32.totalorder %s332, %s333
      %p347 = scmp.eq.s32.totalorder %s32, 3
      %p348 = por %p346, %p347
      %p350 = scmp.ne.s32.totalorder %s333, %s349
      %p351 = scmp.eq.s32.totalorder %s32, 0
      %p352 = por %p350, %p351
      %s353 = ssub.s32 %s34, %s41
      %p354 = scmp.eq.s32.totalorder %s353, 0
      %s356 = sadd.s32 %s355, 1
      %s357 = scalar_select %p354, %s355, %s356
      %p360 = pneg %p354
      %p361 = scmp.eq.s32.totalorder %s26, 3
      %p362 = por %p360, %p361
      %p363 = scmp.ne.s32.totalorder %s355, %s358
      %p364 = scmp.eq.s32.totalorder %s26, 0
      %p365 = por %p363, %p364
      %p366 = scmp.ne.s32.totalorder %s355, %s358
      %p367 = scmp.eq.s32.totalorder %s31, 3
      %p368 = por %p366, %p367
      %p369 = scmp.ne.s32.totalorder %s358, %s359
      %p370 = scmp.eq.s32.totalorder %s31, 0
      %p371 = por %p369, %p370
      %p372 = scmp.ne.s32.totalorder %s358, %s359
      %p373 = scmp.eq.s32.totalorder %s32, 3
      %p374 = por %p372, %p373
      %p376 = scmp.ne.s32.totalorder %s359, %s375
      %p377 = scmp.eq.s32.totalorder %s32, 0
      %p378 = por %p376, %p377
      %s379 = ssub.s32 %s34, %s41
      %p380 = scmp.eq.s32.totalorder %s379, 0
      %s382 = sadd.s32 %s381, 1
      %s383 = scalar_select %p380, %s381, %s382
      %p386 = pneg %p380
      %p387 = scmp.eq.s32.totalorder %s26, 3
      %p388 = por %p386, %p387
      %p389 = scmp.ne.s32.totalorder %s381, %s384
      %p390 = scmp.eq.s32.totalorder %s26, 0
      %p391 = por %p389, %p390
      %p392 = scmp.ne.s32.totalorder %s381, %s384
      %p393 = scmp.eq.s32.totalorder %s31, 3
      %p394 = por %p392, %p393
      %p395 = scmp.ne.s32.totalorder %s384, %s385
      %p396 = scmp.eq.s32.totalorder %s31, 0
      %p397 = por %p395, %p396
      %p398 = scmp.ne.s32.totalorder %s384, %s385
      %p399 = scmp.eq.s32.totalorder %s32, 3
      %p400 = por %p398, %p399
      %p402 = scmp.ne.s32.totalorder %s385, %s401
      %p403 = scmp.eq.s32.totalorder %s32, 0
      %p404 = por %p402, %p403
      %s406 = sadd.s32 %s405, 1
      %p409 = scmp.eq.s32.totalorder %s26, 3
      %p410 = scmp.ne.s32.totalorder %s405, %s407
      %p411 = scmp.eq.s32.totalorder %s26, 0
      %p412 = por %p410, %p411
      %p413 = scmp.ne.s32.totalorder %s405, %s407
      %p414 = scmp.eq.s32.totalorder %s31, 3
      %p415 = por %p413, %p414
      %p416 = scmp.ne.s32.totalorder %s407, %s408
      %p417 = scmp.eq.s32.totalorder %s31, 0
      %p418 = por %p416, %p417
      %p419 = scmp.ne.s32.totalorder %s407, %s408
      %p420 = scmp.eq.s32.totalorder %s32, 3
      %p421 = por %p419, %p420
      %p423 = scmp.ne.s32.totalorder %s408, %s422
      %p424 = scmp.eq.s32.totalorder %s32, 0
      %p425 = por %p423, %p424
      %s427 = sadd.s32 %s426, 1
      %p430 = scmp.eq.s32.totalorder %s26, 3
      %p431 = scmp.ne.s32.totalorder %s426, %s428
      %p432 = scmp.eq.s32.totalorder %s26, 0
      %p433 = por %p431, %p432
      %p434 = scmp.ne.s32.totalorder %s426, %s428
      %p435 = scmp.eq.s32.totalorder %s31, 3
      %p436 = por %p434, %p435
      %p437 = scmp.ne.s32.totalorder %s428, %s429
      %p438 = scmp.eq.s32.totalorder %s31, 0
      %p439 = por %p437, %p438
      %p440 = scmp.ne.s32.totalorder %s428, %s429
      %p441 = scmp.eq.s32.totalorder %s32, 3
      %p442 = por %p440, %p441
      %p444 = scmp.ne.s32.totalorder %s429, %s443
      %p445 = scmp.eq.s32.totalorder %s32, 0
      %p446 = por %p444, %p445
      %s448 = sadd.s32 %s447, 1
      %p451 = scmp.eq.s32.totalorder %s26, 3
      %p452 = scmp.ne.s32.totalorder %s447, %s449
      %p453 = scmp.eq.s32.totalorder %s26, 0
      %p454 = por %p452, %p453
      %p455 = scmp.ne.s32.totalorder %s447, %s449
      %p456 = scmp.eq.s32.totalorder %s31, 3
      %p457 = por %p455, %p456
      %p458 = scmp.ne.s32.totalorder %s449, %s450
      %p459 = scmp.eq.s32.totalorder %s31, 0
      %p460 = por %p458, %p459
      %p461 = scmp.ne.s32.totalorder %s449, %s450
      %p462 = scmp.eq.s32.totalorder %s32, 3
      %p463 = por %p461, %p462
      %p465 = scmp.ne.s32.totalorder %s450, %s464
      %p466 = scmp.eq.s32.totalorder %s32, 0
      %p467 = por %p465, %p466
      %s468 = ssub.s32 %s33, %s45
      %p469 = scmp.eq.s32.totalorder %s468, 0
      %s471 = sadd.s32 %s470, 1
      %s472 = scalar_select %p469, %s470, %s471
      %p475 = pneg %p469
      %p476 = scmp.eq.s32.totalorder %s26, 3
      %p477 = por %p475, %p476
      %p478 = scmp.ne.s32.totalorder %s470, %s473
      %p479 = scmp.eq.s32.totalorder %s26, 0
      %p480 = por %p478, %p479
      %p481 = scmp.ne.s32.totalorder %s470, %s473
      %p482 = scmp.eq.s32.totalorder %s31, 3
      %p483 = por %p481, %p482
      %p484 = scmp.ne.s32.totalorder %s473, %s474
      %p485 = scmp.eq.s32.totalorder %s31, 0
      %p486 = por %p484, %p485
      %p487 = scmp.ne.s32.totalorder %s473, %s474
      %p488 = scmp.eq.s32.totalorder %s32, 3
      %p489 = por %p487, %p488
      %p491 = scmp.ne.s32.totalorder %s474, %s490
      %p492 = scmp.eq.s32.totalorder %s32, 0
      %p493 = por %p491, %p492
      %p494 = scmp.le.s32.totalorder 1, %s26
      %p495 = scmp.lt.s32.totalorder %s26, 5
      %p496 = pnand %p494, %p495
      %p497 = pneg %p496
      // Predicated region
      $region9: #{metaformer_forward.1} parent=5 // pred_check
        _
      $region10: #{metaformer_forward.1} parent=5 // pred_check_branch
        %499 = sbr.rel (%p496) target = $region12
      $region11: #{metaformer_forward.1} parent=5 // pred_region
        %s500 = ssub.s32 %s26, 1
        // Predicated region
        $region13: #{metaformer_forward.1} parent=11 // pred_check
          %p501 = pneg %p267
        $region14: #{metaformer_forward.1} parent=11 // pred_check_branch
          %503 = sbr.rel (%p501) target = $region16
        $region15: #{metaformer_forward.1} parent=11 // pred_region
          _
        $region16: #{metaformer_forward.1} parent=11 // pred_fallthru
          _
        // Predicated region
        $region17: #{metaformer_forward.1} parent=11 // pred_check
          %p504 = pneg %p418
        $region18: #{metaformer_forward.1} parent=11 // pred_check_branch
          %506 = sbr.rel (%p504) target = $region20
        $region19: #{metaformer_forward.1} parent=11 // pred_region
          _
        $region20: #{metaformer_forward.1} parent=11 // pred_fallthru
          _
        // Predicated region
        $region21: #{metaformer_forward.1} parent=11 // pred_check
          %p507 = pneg %p439
        $region22: #{metaformer_forward.1} parent=11 // pred_check_branch
          %509 = sbr.rel (%p507) target = $region24
        $region23: #{metaformer_forward.1} parent=11 // pred_region
          _
        $region24: #{metaformer_forward.1} parent=11 // pred_fallthru
          _
        // Predicated region
        $region25: #{metaformer_forward.1} parent=11 // pred_check
          %p510 = pneg %p460
        $region26: #{metaformer_forward.1} parent=11 // pred_check_branch
          %512 = sbr.rel (%p510) target = $region28
        $region27: #{metaformer_forward.1} parent=11 // pred_region
          _
        $region28: #{metaformer_forward.1} parent=11 // pred_fallthru
          _
      $region12: #{metaformer_forward.1} parent=5 // pred_fallthru
        _
      %p513 = scmp.lt.s32.totalorder %s26, 4
      // Predicated region
      $region29: #{metaformer_forward.1} parent=5 // pred_check
        %p514 = pneg %p513
      $region30: #{metaformer_forward.1} parent=5 // pred_check_branch
        %516 = sbr.rel (%p514) target = $region32
      $region31: #{metaformer_forward.1} parent=5 // pred_region
        // Predicated region
        $region33: #{metaformer_forward.1} parent=31 // pred_check
          %p517 = pneg %p58
        $region34: #{metaformer_forward.1} parent=31 // pred_check_branch
          %519 = sbr.rel (%p517) target = $region36
        $region35: #{metaformer_forward.1} parent=31 // pred_region
          %p520 = scmp.lt.s32.totalorder %s33, 1
          %s521 = scalar_select %p520, %s33, 1
          %s522 = smul.addr %s521, 8
          %s523 = scalar_lea.vmem %s0, %s522
        $region36: #{metaformer_forward.1} parent=31 // pred_fallthru
          _
        // Predicated region
        $region37: #{metaformer_forward.1} parent=31 // pred_check
          %p524 = pneg %p84
        $region38: #{metaformer_forward.1} parent=31 // pred_check_branch
          %526 = sbr.rel (%p524) target = $region40
        $region39: #{metaformer_forward.1} parent=31 // pred_region
          %p527 = scmp.lt.s32.totalorder %s34, 1
          %s528 = scalar_select %p527, %s34, 1
          %s529 = scalar_lea.vmem %s1, %s528
        $region40: #{metaformer_forward.1} parent=31 // pred_fallthru
          _
        // Predicated region
        $region41: #{metaformer_forward.1} parent=31 // pred_check
          %p530 = pneg %p110
        $region42: #{metaformer_forward.1} parent=31 // pred_check_branch
          %532 = sbr.rel (%p530) target = $region44
        $region43: #{metaformer_forward.1} parent=31 // pred_region
          %p533 = scmp.lt.s32.totalorder %s34, 1
          %s534 = scalar_select %p533, %s34, 1
          %s535 = scalar_lea.vmem %s2, %s534
        $region44: #{metaformer_forward.1} parent=31 // pred_fallthru
          _
        // Predicated region
        $region45: #{metaformer_forward.1} parent=31 // pred_check
          %p536 = pneg %p136
        $region46: #{metaformer_forward.1} parent=31 // pred_check_branch
          %538 = sbr.rel (%p536) target = $region48
        $region47: #{metaformer_forward.1} parent=31 // pred_region
          %p539 = scmp.lt.s32.totalorder %s34, 1
          %s540 = scalar_select %p539, %s34, 1
          %s541 = smul.addr %s540, 16
          %s542 = smul.addr %s541, 4
          %s543 = scalar_lea.vmem %s3, %s542
        $region48: #{metaformer_forward.1} parent=31 // pred_fallthru
          _
        // Predicated region
        $region49: #{metaformer_forward.1} parent=31 // pred_check
          %p544 = pneg %p162
        $region50: #{metaformer_forward.1} parent=31 // pred_check_branch
          %546 = sbr.rel (%p544) target = $region52
        $region51: #{metaformer_forward.1} parent=31 // pred_region
          %p547 = scmp.lt.s32.totalorder %s34, 1
          %s548 = scalar_select %p547, %s34, 1
          %s549 = smul.addr %s548, 4
          %s550 = smul.addr %s549, 4
          %s551 = scalar_lea.vmem %s4, %s550
        $region52: #{metaformer_forward.1} parent=31 // pred_fallthru
          _
        // Predicated region
        $region53: #{metaformer_forward.1} parent=31 // pred_check
          %p552 = pneg %p188
        $region54: #{metaformer_forward.1} parent=31 // pred_check_branch
          %554 = sbr.rel (%p552) target = $region56
        $region55: #{metaformer_forward.1} parent=31 // pred_region
          %p555 = scmp.lt.s32.totalorder %s34, 1
          %s556 = scalar_select %p555, %s34, 1
          %s557 = smul.addr %s556, 4
          %s558 = smul.addr %s557, 4
          %s559 = scalar_lea.vmem %s5, %s558
        $region56: #{metaformer_forward.1} parent=31 // pred_fallthru
          _
        // Predicated region
        $region57: #{metaformer_forward.1} parent=31 // pred_check
          %p560 = pneg %p214
        $region58: #{metaformer_forward.1} parent=31 // pred_check_branch
          %562 = sbr.rel (%p560) target = $region60
        $region59: #{metaformer_forward.1} parent=31 // pred_region
          %p563 = scmp.lt.s32.totalorder %s34, 1
          %s564 = scalar_select %p563, %s34, 1
          %s565 = scalar_lea.vmem %s6, %s564
        $region60: #{metaformer_forward.1} parent=31 // pred_fallthru
          _
        // Predicated region
        $region61: #{metaformer_forward.1} parent=31 // pred_check
          %p566 = pneg %p240
        $region62: #{metaformer_forward.1} parent=31 // pred_check_branch
          %568 = sbr.rel (%p566) target = $region64
        $region63: #{metaformer_forward.1} parent=31 // pred_region
          %p569 = scmp.lt.s32.totalorder %s34, 1
          %s570 = scalar_select %p569, %s34, 1
          %s571 = scalar_lea.vmem %s7, %s570
        $region64: #{metaformer_forward.1} parent=31 // pred_fallthru
          _
        // Predicated region
        $region65: #{metaformer_forward.1} parent=31 // pred_check
          %p572 = pneg %p287
        $region66: #{metaformer_forward.1} parent=31 // pred_check_branch
          %574 = sbr.rel (%p572) target = $region68
        $region67: #{metaformer_forward.1} parent=31 // pred_region
          %p575 = scmp.lt.s32.totalorder %s34, 1
          %s576 = scalar_select %p575, %s34, 1
          %s577 = smul.addr %s576, 4
          %s578 = smul.addr %s577, 4
          %s579 = scalar_lea.vmem %s9, %s578
        $region68: #{metaformer_forward.1} parent=31 // pred_fallthru
          _
        // Predicated region
        $region69: #{metaformer_forward.1} parent=31 // pred_check
          %p580 = pneg %p313
        $region70: #{metaformer_forward.1} parent=31 // pred_check_branch
          %582 = sbr.rel (%p580) target = $region72
        $region71: #{metaformer_forward.1} parent=31 // pred_region
          %p583 = scmp.lt.s32.totalorder %s34, 1
          %s584 = scalar_select %p583, %s34, 1
          %s585 = scalar_lea.vmem %s10, %s584
        $region72: #{metaformer_forward.1} parent=31 // pred_fallthru
          _
        // Predicated region
        $region73: #{metaformer_forward.1} parent=31 // pred_check
          %p586 = pneg %p339
        $region74: #{metaformer_forward.1} parent=31 // pred_check_branch
          %588 = sbr.rel (%p586) target = $region76
        $region75: #{metaformer_forward.1} parent=31 // pred_region
          %p589 = scmp.lt.s32.totalorder %s34, 1
          %s590 = scalar_select %p589, %s34, 1
          %s591 = scalar_lea.vmem %s11, %s590
        $region76: #{metaformer_forward.1} parent=31 // pred_fallthru
          _
        // Predicated region
        $region77: #{metaformer_forward.1} parent=31 // pred_check
          %p592 = pneg %p365
        $region78: #{metaformer_forward.1} parent=31 // pred_check_branch
          %594 = sbr.rel (%p592) target = $region80
        $region79: #{metaformer_forward.1} parent=31 // pred_region
          %p595 = scmp.lt.s32.totalorder %s34, 1
          %s596 = scalar_select %p595, %s34, 1
          %s597 = smul.addr %s596, 4
          %s598 = smul.addr %s597, 4
          %s599 = scalar_lea.vmem %s12, %s598
        $region80: #{metaformer_forward.1} parent=31 // pred_fallthru
          _
        // Predicated region
        $region81: #{metaformer_forward.1} parent=31 // pred_check
          %p600 = pneg %p391
        $region82: #{metaformer_forward.1} parent=31 // pred_check_branch
          %602 = sbr.rel (%p600) target = $region84
        $region83: #{metaformer_forward.1} parent=31 // pred_region
          %p603 = scmp.lt.s32.totalorder %s34, 1
          %s604 = scalar_select %p603, %s34, 1
          %s605 = smul.addr %s604, 16
          %s606 = smul.addr %s605, 4
          %s607 = scalar_lea.vmem %s13, %s606
        $region84: #{metaformer_forward.1} parent=31 // pred_fallthru
          _
      $region32: #{metaformer_forward.1} parent=5 // pred_fallthru
        _
      %p608 = scmp.le.s32.totalorder 1, %s26
      %p609 = scmp.lt.s32.totalorder %s26, 5
      %p610 = pnand %p608, %p609
      %p611 = pneg %p610
      // Predicated region
      $region85: #{metaformer_forward.1} parent=5 // pred_check
        _
      $region86: #{metaformer_forward.1} parent=5 // pred_check_branch
        %613 = sbr.rel (%p610) target = $region88
      $region87: #{metaformer_forward.1} parent=5 // pred_region
        %s614 = ssub.s32 %s26, 1
        %p615 = scmp.lt.s32.totalorder %s35, 1
        %s616 = scalar_select %p615, %s35, 1
        %s617 = smul.addr %s616, 8
        %s618 = scalar_lea.vmem %s0, %s617
        %p619 = pneg %p64
        %p620 = pneg %p61
        %p621 = scmp.lt.s32.totalorder %s36, 1
        %s622 = scalar_select %p621, %s36, 1
        %s623 = scalar_lea.vmem %s1, %s622
        %p624 = pneg %p90
        %p625 = pneg %p87
        %p626 = scmp.lt.s32.totalorder %s36, 1
        %s627 = scalar_select %p626, %s36, 1
        %s628 = scalar_lea.vmem %s2, %s627
        %p629 = pneg %p116
        %p630 = pneg %p113
        %p631 = scmp.lt.s32.totalorder %s36, 1
        %s632 = scalar_select %p631, %s36, 1
        %s633 = smul.addr %s632, 16
        %s634 = smul.addr %s633, 4
        %s635 = scalar_lea.vmem %s3, %s634
        %p636 = pneg %p142
        %p637 = pneg %p139
        %p638 = scmp.lt.s32.totalorder %s36, 1
        %s639 = scalar_select %p638, %s36, 1
        %s640 = smul.addr %s639, 4
        %s641 = smul.addr %s640, 4
        %s642 = scalar_lea.vmem %s4, %s641
        %p643 = pneg %p168
        %p644 = pneg %p165
        %p645 = scmp.lt.s32.totalorder %s36, 1
        %s646 = scalar_select %p645, %s36, 1
        %s647 = smul.addr %s646, 4
        %s648 = smul.addr %s647, 4
        %s649 = scalar_lea.vmem %s5, %s648
        %p650 = pneg %p194
        %p651 = pneg %p191
        %p652 = scmp.lt.s32.totalorder %s36, 1
        %s653 = scalar_select %p652, %s36, 1
        %s654 = scalar_lea.vmem %s6, %s653
        %p655 = pneg %p220
        %p656 = pneg %p217
        %p657 = scmp.lt.s32.totalorder %s36, 1
        %s658 = scalar_select %p657, %s36, 1
        %s659 = scalar_lea.vmem %s7, %s658
        %p660 = pneg %p246
        %p661 = pneg %p243
        %p662 = pneg %p267
        %p663 = pneg %p264
        %p664 = scmp.lt.s32.totalorder %s36, 1
        %s665 = scalar_select %p664, %s36, 1
        %s666 = smul.addr %s665, 4
        %s667 = smul.addr %s666, 4
        %s668 = scalar_lea.vmem %s9, %s667
        %p669 = pneg %p293
        %p670 = pneg %p290
        %p671 = scmp.lt.s32.totalorder %s36, 1
        %s672 = scalar_select %p671, %s36, 1
        %s673 = scalar_lea.vmem %s10, %s672
        %p674 = pneg %p319
        %p675 = pneg %p316
        %p676 = scmp.lt.s32.totalorder %s36, 1
        %s677 = scalar_select %p676, %s36, 1
        %s678 = scalar_lea.vmem %s11, %s677
        %p679 = pneg %p345
        %p680 = pneg %p342
        %p681 = scmp.lt.s32.totalorder %s36, 1
        %s682 = scalar_select %p681, %s36, 1
        %s683 = smul.addr %s682, 4
        %s684 = smul.addr %s683, 4
        %s685 = scalar_lea.vmem %s12, %s684
        %p686 = pneg %p371
        %p687 = pneg %p368
        %p688 = scmp.lt.s32.totalorder %s36, 1
        %s689 = scalar_select %p688, %s36, 1
        %s690 = smul.addr %s689, 16
        %s691 = smul.addr %s690, 4
        %s692 = scalar_lea.vmem %s13, %s691
        %p693 = pneg %p397
        %p694 = pneg %p394
        %p695 = pneg %p418
        %p696 = pneg %p415
        %p697 = pneg %p439
        %p698 = pneg %p436
        %p699 = pneg %p460
        %p700 = pneg %p457
        %p701 = pneg %p486
        %p702 = pneg %p483
        %s703 = sand.u32 %s473, 1
        %s704 = scalar_lea.sflag [#allocation4], %s703
        %s705 = sand.u32 %s473, 1
        %s706 = smul.addr %s705, 8
        %s707 = scalar_lea.vmem [#allocation3], %s706
        %p708 = scmp.lt.s32.totalorder %s35, 1
        %s709 = scalar_select %p708, %s35, 1
        %s710 = smul.addr %s709, 8
        %s711 = scalar_lea.vmem %s0, %s710
        %p712 = scmp.lt.s32.totalorder %s36, 1
        %s713 = scalar_select %p712, %s36, 1
        %s714 = scalar_lea.vmem %s1, %s713
        %p715 = scmp.lt.s32.totalorder %s36, 1
        %s716 = scalar_select %p715, %s36, 1
        %s717 = scalar_lea.vmem %s2, %s716
        %p718 = scmp.lt.s32.totalorder %s36, 1
        %s719 = scalar_select %p718, %s36, 1
        %s720 = smul.addr %s719, 16
        %s721 = smul.addr %s720, 4
        %s722 = scalar_lea.vmem %s3, %s721
        %p723 = scmp.lt.s32.totalorder %s36, 1
        %s724 = scalar_select %p723, %s36, 1
        %s725 = smul.addr %s724, 4
        %s726 = smul.addr %s725, 4
        %s727 = scalar_lea.vmem %s4, %s726
        %p728 = scmp.lt.s32.totalorder %s36, 1
        %s729 = scalar_select %p728, %s36, 1
        %s730 = smul.addr %s729, 4
        %s731 = smul.addr %s730, 4
        %s732 = scalar_lea.vmem %s5, %s731
        %p733 = scmp.lt.s32.totalorder %s36, 1
        %s734 = scalar_select %p733, %s36, 1
        %s735 = scalar_lea.vmem %s6, %s734
        %p736 = scmp.lt.s32.totalorder %s36, 1
        %s737 = scalar_select %p736, %s36, 1
        %s738 = scalar_lea.vmem %s7, %s737
        %p739 = scmp.lt.s32.totalorder %s36, 1
        %s740 = scalar_select %p739, %s36, 1
        %s741 = smul.addr %s740, 4
        %s742 = smul.addr %s741, 4
        %s743 = scalar_lea.vmem %s9, %s742
        %p744 = scmp.lt.s32.totalorder %s36, 1
        %s745 = scalar_select %p744, %s36, 1
        %s746 = scalar_lea.vmem %s10, %s745
        %p747 = scmp.lt.s32.totalorder %s36, 1
        %s748 = scalar_select %p747, %s36, 1
        %s749 = scalar_lea.vmem %s11, %s748
        %p750 = scmp.lt.s32.totalorder %s36, 1
        %s751 = scalar_select %p750, %s36, 1
        %s752 = smul.addr %s751, 4
        %s753 = smul.addr %s752, 4
        %s754 = scalar_lea.vmem %s12, %s753
        %p755 = scmp.lt.s32.totalorder %s36, 1
        %s756 = scalar_select %p755, %s36, 1
        %s757 = smul.addr %s756, 16
        %s758 = smul.addr %s757, 4
        %s759 = scalar_lea.vmem %s13, %s758
        %p761 = scmp.eq.s32.totalorder %s36, 0
        // Predicated region
        $region89: #{metaformer_forward.1} parent=87 // pred_check
          %p762 = pneg %p761
        $region90: #{metaformer_forward.1} parent=87 // pred_check_branch
          %764 = sbr.rel (%p762) target = $region92
        $region91: #{metaformer_forward.1} parent=87 // pred_region
          %v765 = vld [vmem:[%s711] sm:$0xff]
          %vm766 = vcmask 261120
          %767 = vst.msk [vmem:[#allocation2] sm:$0xff] %vm766, %v765
        $region92: #{metaformer_forward.1} parent=87 // pred_fallthru
          _
        %v768 = vld [vmem:[#allocation2] sm:$0xff]
        %v769 = vld [vmem:[%s714] sm:$0x1]
        %v770 = vld [vmem:[%s717] sm:$0x1]
        %vm771 = vcmask 261120
        %v772 = vsel %vm771, %v768, 0.0
        %773 = vadd.xlane.f32.xlu0 %v772
        %v774 = vpop.xlane.xlu0 %773
        %v775 = vrcp.pop 32.0
        %v776 = vmul.f32 %v774, %v775
        %v777 = vsub.f32 %v768, %v776
        %v778 = vmul.f32 %v777, %v777
        %v779 = vsel %vm771, %v778, 0.0
        %780 = vadd.xlane.f32.xlu0 %v779
        %v781 = vpop.xlane.xlu0 %780
        %v782 = vmul.f32 %v781, %v775
        %v783 = vadd.f32 %v782, 1e-05
        %v784 = vrsqrt.pop %v783
        %v785 = vmul.f32 %v777, %v784
        %v787 = vlaneseq
        %v788 = vshrl.u32 %v787, 7
        %v789 = vsub.s32 0, %v788
        %v790 = vrot.slane %v769, %v789
        %v792 = vmul.f32 %v785, %v790
        %v794 = vlaneseq
        %v795 = vshrl.u32 %v794, 7
        %v796 = vsub.s32 0, %v795
        %v797 = vrot.slane %v770, %v796
        %v799 = vadd.f32 %v792, %v797
        %v800 = vpack.c.bf16 %v799, %v799
        %v801 = vld [vmem:[%s722] sm:$0xf]
        %v802 = vld [vmem:[%s722 + $0x4] sm:$0xf]
        %v803 = vld [vmem:[%s722 + $0x8] sm:$0xf]
        %v804 = vld [vmem:[%s722 + $0xc] sm:$0xf]
        %v805 = vld [vmem:[%s722 + $0x10] sm:$0xf]
        %v806 = vld [vmem:[%s722 + $0x14] sm:$0xf]
        %v807 = vld [vmem:[%s722 + $0x18] sm:$0xf]
        %v808 = vld [vmem:[%s722 + $0x1c] sm:$0xf]
        %v809 = vld [vmem:[%s722 + $0x20] sm:$0xf]
        %v810 = vld [vmem:[%s722 + $0x24] sm:$0xf]
        %v811 = vld [vmem:[%s722 + $0x28] sm:$0xf]
        %v812 = vld [vmem:[%s722 + $0x2c] sm:$0xf]
        %v813 = vld [vmem:[%s722 + $0x30] sm:$0xf]
        %v814 = vld [vmem:[%s722 + $0x34] sm:$0xf]
        %v815 = vld [vmem:[%s722 + $0x38] sm:$0xf]
        %v816 = vld [vmem:[%s722 + $0x3c] sm:$0xf]
        %v821 = vunpack.c.l.b16 %v801
        %v822 = vunpack.c.l.b16 %v802
        %v823 = vunpack.c.l.b16 %v803
        %v824 = vunpack.c.l.b16 %v804
        %v825 = vpack.c.b16 %v822, %v821
        %v826 = vpack.c.b16 %v824, %v823
        %v830 = vsel %vm771, %v800, 0
        %832 = vmatprep.subr.bf16.mxu0 0
        %833 = vmatpush1.bf16.msra.mxu0 0
        %834 = vmatprep.subr.bf16.mxu0 0
        %835 = vmatpush1.bf16.msra.mxu0 0
        %836 = vmatprep.subr.bf16.mxu0 0
        %837 = vmatpush1.bf16.msra.mxu0 0
        %838 = vmatprep.subr.bf16.mxu0 0
        %839 = vmatpush1.bf16.msra.mxu0 0
        %840 = vmatprep.subr.bf16.mxu0 0
        %841 = vmatpush1.bf16.msra.mxu0 0
        %842 = vmatprep.subr.bf16.mxu0 0
        %843 = vmatpush1.bf16.msra.mxu0 0
        %844 = vmatprep.subr.bf16.mxu0 0
        %845 = vmatpush1.bf16.msra.mxu0 %v826
        %846 = vmatprep.subr.bf16.mxu0 0
        %847 = vmatpush1.bf16.msra.mxu0 %v825
        %848 = vmatprep.subr.bf16.mxu0 0
        %849 = vmatpush2.bf16.msra.mxu0 0
        %850 = vmatprep.subr.bf16.mxu0 0
        %851 = vmatpush2.bf16.msra.mxu0 0
        %852 = vmatprep.subr.bf16.mxu0 0
        %853 = vmatpush2.bf16.msra.mxu0 0
        %854 = vmatprep.subr.bf16.mxu0 0
        %855 = vmatpush2.bf16.msra.mxu0 0
        %856 = vmatprep.subr.bf16.mxu0 0
        %857 = vmatpush2.bf16.msra.mxu0 0
        %858 = vmatprep.subr.bf16.mxu0 0
        %859 = vmatpush2.bf16.msra.mxu0 0
        %860 = vmatprep.subr.bf16.mxu0 0
        %861 = vmatpush2.bf16.msra.mxu0 0
        %862 = vmatprep.subr.bf16.mxu0 0
        %863 = vmatpush2.bf16.msra.mxu0 0
        %864 = vmatprep.mubr.bf16.mxu0 0
        %865 = vmatmul.mubr.bf16.gmra.mxu0 %v830
        %v866 = vpop.f32.mrf.mxu0
        %v867 = vadd.f32 0.0, %v866
        %v868 = vpop.f32.mrf.mxu0
        %v869 = vpop.f32.mrf.mxu0
        %v870 = vpop.f32.mrf.mxu0
        %871 = vdwg.mxu0
        %v876 = vunpack.c.l.b16 %v805
        %v877 = vunpack.c.l.b16 %v806
        %v878 = vunpack.c.l.b16 %v807
        %v879 = vunpack.c.l.b16 %v808
        %v880 = vpack.c.b16 %v877, %v876
        %v881 = vpack.c.b16 %v879, %v878
        %884 = vmatprep.subr.bf16.mxu0 0
        %885 = vmatpush1.bf16.msra.mxu0 0
        %886 = vmatprep.subr.bf16.mxu0 0
        %887 = vmatpush1.bf16.msra.mxu0 0
        %888 = vmatprep.subr.bf16.mxu0 0
        %889 = vmatpush1.bf16.msra.mxu0 0
        %890 = vmatprep.subr.bf16.mxu0 0
        %891 = vmatpush1.bf16.msra.mxu0 0
        %892 = vmatprep.subr.bf16.mxu0 0
        %893 = vmatpush1.bf16.msra.mxu0 0
        %894 = vmatprep.subr.bf16.mxu0 0
        %895 = vmatpush1.bf16.msra.mxu0 0
        %896 = vmatprep.subr.bf16.mxu0 0
        %897 = vmatpush1.bf16.msra.mxu0 %v881
        %898 = vmatprep.subr.bf16.mxu0 0
        %899 = vmatpush1.bf16.msra.mxu0 %v880
        %900 = vmatprep.subr.bf16.mxu0 0
        %901 = vmatpush2.bf16.msra.mxu0 0
        %902 = vmatprep.subr.bf16.mxu0 0
        %903 = vmatpush2.bf16.msra.mxu0 0
        %904 = vmatprep.subr.bf16.mxu0 0
        %905 = vmatpush2.bf16.msra.mxu0 0
        %906 = vmatprep.subr.bf16.mxu0 0
        %907 = vmatpush2.bf16.msra.mxu0 0
        %908 = vmatprep.subr.bf16.mxu0 0
        %909 = vmatpush2.bf16.msra.mxu0 0
        %910 = vmatprep.subr.bf16.mxu0 0
        %911 = vmatpush2.bf16.msra.mxu0 0
        %912 = vmatprep.subr.bf16.mxu0 0
        %913 = vmatpush2.bf16.msra.mxu0 0
        %914 = vmatprep.subr.bf16.mxu0 0
        %915 = vmatpush2.bf16.msra.mxu0 0
        %916 = vmatprep.mubr.bf16.mxu0 0
        %917 = vmatmul.mubr.bf16.gmra.mxu0 %v830
        %v918 = vpop.f32.mrf.mxu0
        %v919 = vadd.f32 0.0, %v918
        %v920 = vpop.f32.mrf.mxu0
        %v921 = vpop.f32.mrf.mxu0
        %v922 = vpop.f32.mrf.mxu0
        %923 = vdwg.mxu0
        %v928 = vunpack.c.l.b16 %v809
        %v929 = vunpack.c.l.b16 %v810
        %v930 = vunpack.c.l.b16 %v811
        %v931 = vunpack.c.l.b16 %v812
        %v932 = vpack.c.b16 %v929, %v928
        %v933 = vpack.c.b16 %v931, %v930
        %936 = vmatprep.subr.bf16.mxu0 0
        %937 = vmatpush1.bf16.msra.mxu0 0
        %938 = vmatprep.subr.bf16.mxu0 0
        %939 = vmatpush1.bf16.msra.mxu0 0
        %940 = vmatprep.subr.bf16.mxu0 0
        %941 = vmatpush1.bf16.msra.mxu0 0
        %942 = vmatprep.subr.bf16.mxu0 0
        %943 = vmatpush1.bf16.msra.mxu0 0
        %944 = vmatprep.subr.bf16.mxu0 0
        %945 = vmatpush1.bf16.msra.mxu0 0
        %946 = vmatprep.subr.bf16.mxu0 0
        %947 = vmatpush1.bf16.msra.mxu0 0
        %948 = vmatprep.subr.bf16.mxu0 0
        %949 = vmatpush1.bf16.msra.mxu0 %v933
        %950 = vmatprep.subr.bf16.mxu0 0
        %951 = vmatpush1.bf16.msra.mxu0 %v932
        %952 = vmatprep.subr.bf16.mxu0 0
        %953 = vmatpush2.bf16.msra.mxu0 0
        %954 = vmatprep.subr.bf16.mxu0 0
        %955 = vmatpush2.bf16.msra.mxu0 0
        %956 = vmatprep.subr.bf16.mxu0 0
        %957 = vmatpush2.bf16.msra.mxu0 0
        %958 = vmatprep.subr.bf16.mxu0 0
        %959 = vmatpush2.bf16.msra.mxu0 0
        %960 = vmatprep.subr.bf16.mxu0 0
        %961 = vmatpush2.bf16.msra.mxu0 0
        %962 = vmatprep.subr.bf16.mxu0 0
        %963 = vmatpush2.bf16.msra.mxu0 0
        %964 = vmatprep.subr.bf16.mxu0 0
        %965 = vmatpush2.bf16.msra.mxu0 0
        %966 = vmatprep.subr.bf16.mxu0 0
        %967 = vmatpush2.bf16.msra.mxu0 0
        %968 = vmatprep.mubr.bf16.mxu0 0
        %969 = vmatmul.mubr.bf16.gmra.mxu0 %v830
        %v970 = vpop.f32.mrf.mxu0
        %v971 = vadd.f32 0.0, %v970
        %v972 = vpop.f32.mrf.mxu0
        %v973 = vpop.f32.mrf.mxu0
        %v974 = vpop.f32.mrf.mxu0
        %975 = vdwg.mxu0
        %v980 = vunpack.c.l.b16 %v813
        %v981 = vunpack.c.l.b16 %v814
        %v982 = vunpack.c.l.b16 %v815
        %v983 = vunpack.c.l.b16 %v816
        %v984 = vpack.c.b16 %v981, %v980
        %v985 = vpack.c.b16 %v983, %v982
        %988 = vmatprep.subr.bf16.mxu0 0
        %989 = vmatpush1.bf16.msra.mxu0 0
        %990 = vmatprep.subr.bf16.mxu0 0
        %991 = vmatpush1.bf16.msra.mxu0 0
        %992 = vmatprep.subr.bf16.mxu0 0
        %993 = vmatpush1.bf16.msra.mxu0 0
        %994 = vmatprep.subr.bf16.mxu0 0
        %995 = vmatpush1.bf16.msra.mxu0 0
        %996 = vmatprep.subr.bf16.mxu0 0
        %997 = vmatpush1.bf16.msra.mxu0 0
        %998 = vmatprep.subr.bf16.mxu0 0
        %999 = vmatpush1.bf16.msra.mxu0 0
        %1000 = vmatprep.subr.bf16.mxu0 0
        %1001 = vmatpush1.bf16.msra.mxu0 %v985
        %1002 = vmatprep.subr.bf16.mxu0 0
        %1003 = vmatpush1.bf16.msra.mxu0 %v984
        %1004 = vmatprep.subr.bf16.mxu0 0
        %1005 = vmatpush2.bf16.msra.mxu0 0
        %1006 = vmatprep.subr.bf16.mxu0 0
        %1007 = vmatpush2.bf16.msra.mxu0 0
        %1008 = vmatprep.subr.bf16.mxu0 0
        %1009 = vmatpush2.bf16.msra.mxu0 0
        %1010 = vmatprep.subr.bf16.mxu0 0
        %1011 = vmatpush2.bf16.msra.mxu0 0
        %1012 = vmatprep.subr.bf16.mxu0 0
        %1013 = vmatpush2.bf16.msra.mxu0 0
        %1014 = vmatprep.subr.bf16.mxu0 0
        %1015 = vmatpush2.bf16.msra.mxu0 0
        %1016 = vmatprep.subr.bf16.mxu0 0
        %1017 = vmatpush2.bf16.msra.mxu0 0
        %1018 = vmatprep.subr.bf16.mxu0 0
        %1019 = vmatpush2.bf16.msra.mxu0 0
        %1020 = vmatprep.mubr.bf16.mxu0 0
        %1021 = vmatmul.mubr.bf16.gmra.mxu0 %v830
        %v1022 = vpop.f32.mrf.mxu0
        %v1023 = vadd.f32 0.0, %v1022
        %v1024 = vpop.f32.mrf.mxu0
        %v1025 = vpop.f32.mrf.mxu0
        %v1026 = vpop.f32.mrf.mxu0
        %1027 = vdwg.mxu0
        %v1028 = vld [vmem:[%s727] sm:$0xf]
        %v1029 = vld [vmem:[%s727 + $0x4] sm:$0xf]
        %v1030 = vld [vmem:[%s727 + $0x8] sm:$0xf]
        %v1031 = vld [vmem:[%s727 + $0xc] sm:$0xf]
        %v1032 = vpack.c.bf16 %v867, %v867
        %v1033 = vpack.c.bf16 %v919, %v919
        %v1034 = vpack.c.bf16 %v971, %v971
        %v1035 = vpack.c.bf16 %v1023, %v1023
        %vm1036 = vcmask 64512
        %v1038 = vsel %vm1036, %v1028, 0
        %vm1040 = vcmask 1043456
        %v1042 = vsel %vm1040, %v1032, 0
        %1044 = vmatprep.subr.bf16.mxu0 0
        %1045 = vmatpush1.bf16.msra.mxu0 0
        %1046 = vmatprep.subr.bf16.mxu0 0
        %1047 = vmatpush1.bf16.msra.mxu0 0
        %1048 = vmatprep.subr.bf16.mxu0 0
        %1049 = vmatpush1.bf16.msra.mxu0 0
        %1050 = vmatprep.subr.bf16.mxu0 0
        %1051 = vmatpush1.bf16.msra.mxu0 0
        %1052 = vmatprep.subr.bf16.mxu0 0
        %1053 = vmatpush1.bf16.msra.mxu0 0
        %1054 = vmatprep.subr.bf16.mxu0 0
        %1055 = vmatpush1.bf16.msra.mxu0 0
        %1056 = vmatprep.subr.bf16.mxu0 0
        %1057 = vmatpush1.bf16.msra.mxu0 0
        %1058 = vmatprep.subr.bf16.mxu0 0
        %1059 = vmatpush1.bf16.msra.mxu0 %v1042
        %1060 = vmatprep.subr.bf16.mxu0 0
        %1061 = vmatpush2.bf16.msra.mxu0 0
        %1062 = vmatprep.subr.bf16.mxu0 0
        %1063 = vmatpush2.bf16.msra.mxu0 0
        %1064 = vmatprep.subr.bf16.mxu0 0
        %1065 = vmatpush2.bf16.msra.mxu0 0
        %1066 = vmatprep.subr.bf16.mxu0 0
        %1067 = vmatpush2.bf16.msra.mxu0 0
        %1068 = vmatprep.subr.bf16.mxu0 0
        %1069 = vmatpush2.bf16.msra.mxu0 0
        %1070 = vmatprep.subr.bf16.mxu0 0
        %1071 = vmatpush2.bf16.msra.mxu0 0
        %1072 = vmatprep.subr.bf16.mxu0 0
        %1073 = vmatpush2.bf16.msra.mxu0 0
        %1074 = vmatprep.subr.bf16.mxu0 0
        %1075 = vmatpush2.bf16.msra.mxu0 0
        %1076 = vmatprep.mubr.bf16.mxu0 0
        %1077 = vmatmul.mubr.bf16.gmra.mxu0 %v1038
        %v1078 = vpop.f32.mrf.mxu0
        %v1079 = vadd.f32 0.0, %v1078
        %v1080 = vpop.f32.mrf.mxu0
        %v1081 = vpop.f32.mrf.mxu0
        %v1082 = vpop.f32.mrf.mxu0
        %1083 = vdwg.mxu0
        %v1085 = vsel %vm1036, %v1029, 0
        %v1088 = vsel %vm1040, %v1033, 0
        %1090 = vmatprep.subr.bf16.mxu0 0
        %1091 = vmatpush1.bf16.msra.mxu0 0
        %1092 = vmatprep.subr.bf16.mxu0 0
        %1093 = vmatpush1.bf16.msra.mxu0 0
        %1094 = vmatprep.subr.bf16.mxu0 0
        %1095 = vmatpush1.bf16.msra.mxu0 0
        %1096 = vmatprep.subr.bf16.mxu0 0
        %1097 = vmatpush1.bf16.msra.mxu0 0
        %1098 = vmatprep.subr.bf16.mxu0 0
        %1099 = vmatpush1.bf16.msra.mxu0 0
        %1100 = vmatprep.subr.bf16.mxu0 0
        %1101 = vmatpush1.bf16.msra.mxu0 0
        %1102 = vmatprep.subr.bf16.mxu0 0
        %1103 = vmatpush1.bf16.msra.mxu0 0
        %1104 = vmatprep.subr.bf16.mxu0 0
        %1105 = vmatpush1.bf16.msra.mxu0 %v1088
        %1106 = vmatprep.subr.bf16.mxu0 0
        %1107 = vmatpush2.bf16.msra.mxu0 0
        %1108 = vmatprep.subr.bf16.mxu0 0
        %1109 = vmatpush2.bf16.msra.mxu0 0
        %1110 = vmatprep.subr.bf16.mxu0 0
        %1111 = vmatpush2.bf16.msra.mxu0 0
        %1112 = vmatprep.subr.bf16.mxu0 0
        %1113 = vmatpush2.bf16.msra.mxu0 0
        %1114 = vmatprep.subr.bf16.mxu0 0
        %1115 = vmatpush2.bf16.msra.mxu0 0
        %1116 = vmatprep.subr.bf16.mxu0 0
        %1117 = vmatpush2.bf16.msra.mxu0 0
        %1118 = vmatprep.subr.bf16.mxu0 0
        %1119 = vmatpush2.bf16.msra.mxu0 0
        %1120 = vmatprep.subr.bf16.mxu0 0
        %1121 = vmatpush2.bf16.msra.mxu0 0
        %1122 = vmatprep.mubr.bf16.mxu0 0
        %1123 = vmatmul.mubr.bf16.gmra.mxu0 %v1085
        %v1124 = vpop.f32.mrf.mxu0
        %v1125 = vadd.f32 0.0, %v1124
        %v1126 = vpop.f32.mrf.mxu0
        %v1127 = vpop.f32.mrf.mxu0
        %v1128 = vpop.f32.mrf.mxu0
        %1129 = vdwg.mxu0
        %v1131 = vsel %vm1036, %v1030, 0
        %v1134 = vsel %vm1040, %v1034, 0
        %1136 = vmatprep.subr.bf16.mxu0 0
        %1137 = vmatpush1.bf16.msra.mxu0 0
        %1138 = vmatprep.subr.bf16.mxu0 0
        %1139 = vmatpush1.bf16.msra.mxu0 0
        %1140 = vmatprep.subr.bf16.mxu0 0
        %1141 = vmatpush1.bf16.msra.mxu0 0
        %1142 = vmatprep.subr.bf16.mxu0 0
        %1143 = vmatpush1.bf16.msra.mxu0 0
        %1144 = vmatprep.subr.bf16.mxu0 0
        %1145 = vmatpush1.bf16.msra.mxu0 0
        %1146 = vmatprep.subr.bf16.mxu0 0
        %1147 = vmatpush1.bf16.msra.mxu0 0
        %1148 = vmatprep.subr.bf16.mxu0 0
        %1149 = vmatpush1.bf16.msra.mxu0 0
        %1150 = vmatprep.subr.bf16.mxu0 0
        %1151 = vmatpush1.bf16.msra.mxu0 %v1134
        %1152 = vmatprep.subr.bf16.mxu0 0
        %1153 = vmatpush2.bf16.msra.mxu0 0
        %1154 = vmatprep.subr.bf16.mxu0 0
        %1155 = vmatpush2.bf16.msra.mxu0 0
        %1156 = vmatprep.subr.bf16.mxu0 0
        %1157 = vmatpush2.bf16.msra.mxu0 0
        %1158 = vmatprep.subr.bf16.mxu0 0
        %1159 = vmatpush2.bf16.msra.mxu0 0
        %1160 = vmatprep.subr.bf16.mxu0 0
        %1161 = vmatpush2.bf16.msra.mxu0 0
        %1162 = vmatprep.subr.bf16.mxu0 0
        %1163 = vmatpush2.bf16.msra.mxu0 0
        %1164 = vmatprep.subr.bf16.mxu0 0
        %1165 = vmatpush2.bf16.msra.mxu0 0
        %1166 = vmatprep.subr.bf16.mxu0 0
        %1167 = vmatpush2.bf16.msra.mxu0 0
        %1168 = vmatprep.mubr.bf16.mxu0 0
        %1169 = vmatmul.mubr.bf16.gmra.mxu0 %v1131
        %v1170 = vpop.f32.mrf.mxu0
        %v1171 = vadd.f32 0.0, %v1170
        %v1172 = vpop.f32.mrf.mxu0
        %v1173 = vpop.f32.mrf.mxu0
        %v1174 = vpop.f32.mrf.mxu0
        %1175 = vdwg.mxu0
        %v1177 = vsel %vm1036, %v1031, 0
        %v1180 = vsel %vm1040, %v1035, 0
        %1182 = vmatprep.subr.bf16.mxu0 0
        %1183 = vmatpush1.bf16.msra.mxu0 0
        %1184 = vmatprep.subr.bf16.mxu0 0
        %1185 = vmatpush1.bf16.msra.mxu0 0
        %1186 = vmatprep.subr.bf16.mxu0 0
        %1187 = vmatpush1.bf16.msra.mxu0 0
        %1188 = vmatprep.subr.bf16.mxu0 0
        %1189 = vmatpush1.bf16.msra.mxu0 0
        %1190 = vmatprep.subr.bf16.mxu0 0
        %1191 = vmatpush1.bf16.msra.mxu0 0
        %1192 = vmatprep.subr.bf16.mxu0 0
        %1193 = vmatpush1.bf16.msra.mxu0 0
        %1194 = vmatprep.subr.bf16.mxu0 0
        %1195 = vmatpush1.bf16.msra.mxu0 0
        %1196 = vmatprep.subr.bf16.mxu0 0
        %1197 = vmatpush1.bf16.msra.mxu0 %v1180
        %1198 = vmatprep.subr.bf16.mxu0 0
        %1199 = vmatpush2.bf16.msra.mxu0 0
        %1200 = vmatprep.subr.bf16.mxu0 0
        %1201 = vmatpush2.bf16.msra.mxu0 0
        %1202 = vmatprep.subr.bf16.mxu0 0
        %1203 = vmatpush2.bf16.msra.mxu0 0
        %1204 = vmatprep.subr.bf16.mxu0 0
        %1205 = vmatpush2.bf16.msra.mxu0 0
        %1206 = vmatprep.subr.bf16.mxu0 0
        %1207 = vmatpush2.bf16.msra.mxu0 0
        %1208 = vmatprep.subr.bf16.mxu0 0
        %1209 = vmatpush2.bf16.msra.mxu0 0
        %1210 = vmatprep.subr.bf16.mxu0 0
        %1211 = vmatpush2.bf16.msra.mxu0 0
        %1212 = vmatprep.subr.bf16.mxu0 0
        %1213 = vmatpush2.bf16.msra.mxu0 0
        %1214 = vmatprep.mubr.bf16.mxu0 0
        %1215 = vmatmul.mubr.bf16.gmra.mxu0 %v1177
        %v1216 = vpop.f32.mrf.mxu0
        %v1217 = vadd.f32 0.0, %v1216
        %v1218 = vpop.f32.mrf.mxu0
        %v1219 = vpop.f32.mrf.mxu0
        %v1220 = vpop.f32.mrf.mxu0
        %1221 = vdwg.mxu0
        %v1222 = vpack.c.bf16 %v1079, %v1079
        %v1223 = vpack.c.bf16 %v1125, %v1125
        %v1224 = vpack.c.bf16 %v1171, %v1171
        %v1225 = vpack.c.bf16 %v1217, %v1217
        %v1226 = vld [vmem:[%s732] sm:$0xf]
        %v1227 = vld [vmem:[%s732 + $0x4] sm:$0xf]
        %v1228 = vld [vmem:[%s732 + $0x8] sm:$0xf]
        %v1229 = vld [vmem:[%s732 + $0xc] sm:$0xf]
        %v1231 = vsel %vm1036, %v1222, 0
        %v1234 = vsel %vm1040, %v1226, 0
        %1236 = vmatprep.subr.bf16.mxu0 0
        %1237 = vmatpush1.bf16.msra.mxu0 0
        %1238 = vmatprep.subr.bf16.mxu0 0
        %1239 = vmatpush1.bf16.msra.mxu0 0
        %1240 = vmatprep.subr.bf16.mxu0 0
        %1241 = vmatpush1.bf16.msra.mxu0 0
        %1242 = vmatprep.subr.bf16.mxu0 0
        %1243 = vmatpush1.bf16.msra.mxu0 0
        %1244 = vmatprep.subr.bf16.mxu0 0
        %1245 = vmatpush1.bf16.msra.mxu0 0
        %1246 = vmatprep.subr.bf16.mxu0 0
        %1247 = vmatpush1.bf16.msra.mxu0 0
        %1248 = vmatprep.subr.bf16.mxu0 0
        %1249 = vmatpush1.bf16.msra.mxu0 0
        %1250 = vmatprep.subr.bf16.mxu0 0
        %1251 = vmatpush1.bf16.msra.mxu0 %v1234
        %1252 = vmatprep.subr.bf16.mxu0 0
        %1253 = vmatpush2.bf16.msra.mxu0 0
        %1254 = vmatprep.subr.bf16.mxu0 0
        %1255 = vmatpush2.bf16.msra.mxu0 0
        %1256 = vmatprep.subr.bf16.mxu0 0
        %1257 = vmatpush2.bf16.msra.mxu0 0
        %1258 = vmatprep.subr.bf16.mxu0 0
        %1259 = vmatpush2.bf16.msra.mxu0 0
        %1260 = vmatprep.subr.bf16.mxu0 0
        %1261 = vmatpush2.bf16.msra.mxu0 0
        %1262 = vmatprep.subr.bf16.mxu0 0
        %1263 = vmatpush2.bf16.msra.mxu0 0
        %1264 = vmatprep.subr.bf16.mxu0 0
        %1265 = vmatpush2.bf16.msra.mxu0 0
        %1266 = vmatprep.subr.bf16.mxu0 0
        %1267 = vmatpush2.bf16.msra.mxu0 0
        %1268 = vmatprep.mubr.bf16.mxu0 0
        %1269 = vmatmul.mubr.bf16.gmra.mxu0 %v1231
        %v1270 = vpop.f32.mrf.mxu0
        %v1271 = vadd.f32 0.0, %v1270
        %v1272 = vpop.f32.mrf.mxu0
        %v1273 = vpop.f32.mrf.mxu0
        %v1274 = vpop.f32.mrf.mxu0
        %1275 = vdwg.mxu0
        %v1277 = vsel %vm1036, %v1223, 0
        %v1280 = vsel %vm1040, %v1227, 0
        %1282 = vmatprep.subr.bf16.mxu0 0
        %1283 = vmatpush1.bf16.msra.mxu0 0
        %1284 = vmatprep.subr.bf16.mxu0 0
        %1285 = vmatpush1.bf16.msra.mxu0 0
        %1286 = vmatprep.subr.bf16.mxu0 0
        %1287 = vmatpush1.bf16.msra.mxu0 0
        %1288 = vmatprep.subr.bf16.mxu0 0
        %1289 = vmatpush1.bf16.msra.mxu0 0
        %1290 = vmatprep.subr.bf16.mxu0 0
        %1291 = vmatpush1.bf16.msra.mxu0 0
        %1292 = vmatprep.subr.bf16.mxu0 0
        %1293 = vmatpush1.bf16.msra.mxu0 0
        %1294 = vmatprep.subr.bf16.mxu0 0
        %1295 = vmatpush1.bf16.msra.mxu0 0
        %1296 = vmatprep.subr.bf16.mxu0 0
        %1297 = vmatpush1.bf16.msra.mxu0 %v1280
        %1298 = vmatprep.subr.bf16.mxu0 0
        %1299 = vmatpush2.bf16.msra.mxu0 0
        %1300 = vmatprep.subr.bf16.mxu0 0
        %1301 = vmatpush2.bf16.msra.mxu0 0
        %1302 = vmatprep.subr.bf16.mxu0 0
        %1303 = vmatpush2.bf16.msra.mxu0 0
        %1304 = vmatprep.subr.bf16.mxu0 0
        %1305 = vmatpush2.bf16.msra.mxu0 0
        %1306 = vmatprep.subr.bf16.mxu0 0
        %1307 = vmatpush2.bf16.msra.mxu0 0
        %1308 = vmatprep.subr.bf16.mxu0 0
        %1309 = vmatpush2.bf16.msra.mxu0 0
        %1310 = vmatprep.subr.bf16.mxu0 0
        %1311 = vmatpush2.bf16.msra.mxu0 0
        %1312 = vmatprep.subr.bf16.mxu0 0
        %1313 = vmatpush2.bf16.msra.mxu0 0
        %1314 = vmatprep.mubr.bf16.mxu0 0
        %1315 = vmatmul.mubr.bf16.gmra.mxu0 %v1277
        %v1316 = vpop.f32.mrf.mxu0
        %v1317 = vadd.f32 0.0, %v1316
        %v1318 = vpop.f32.mrf.mxu0
        %v1319 = vpop.f32.mrf.mxu0
        %v1320 = vpop.f32.mrf.mxu0
        %1321 = vdwg.mxu0
        %v1323 = vsel %vm1036, %v1224, 0
        %v1326 = vsel %vm1040, %v1228, 0
        %1328 = vmatprep.subr.bf16.mxu0 0
        %1329 = vmatpush1.bf16.msra.mxu0 0
        %1330 = vmatprep.subr.bf16.mxu0 0
        %1331 = vmatpush1.bf16.msra.mxu0 0
        %1332 = vmatprep.subr.bf16.mxu0 0
        %1333 = vmatpush1.bf16.msra.mxu0 0
        %1334 = vmatprep.subr.bf16.mxu0 0
        %1335 = vmatpush1.bf16.msra.mxu0 0
        %1336 = vmatprep.subr.bf16.mxu0 0
        %1337 = vmatpush1.bf16.msra.mxu0 0
        %1338 = vmatprep.subr.bf16.mxu0 0
        %1339 = vmatpush1.bf16.msra.mxu0 0
        %1340 = vmatprep.subr.bf16.mxu0 0
        %1341 = vmatpush1.bf16.msra.mxu0 0
        %1342 = vmatprep.subr.bf16.mxu0 0
        %1343 = vmatpush1.bf16.msra.mxu0 %v1326
        %1344 = vmatprep.subr.bf16.mxu0 0
        %1345 = vmatpush2.bf16.msra.mxu0 0
        %1346 = vmatprep.subr.bf16.mxu0 0
        %1347 = vmatpush2.bf16.msra.mxu0 0
        %1348 = vmatprep.subr.bf16.mxu0 0
        %1349 = vmatpush2.bf16.msra.mxu0 0
        %1350 = vmatprep.subr.bf16.mxu0 0
        %1351 = vmatpush2.bf16.msra.mxu0 0
        %1352 = vmatprep.subr.bf16.mxu0 0
        %1353 = vmatpush2.bf16.msra.mxu0 0
        %1354 = vmatprep.subr.bf16.mxu0 0
        %1355 = vmatpush2.bf16.msra.mxu0 0
        %1356 = vmatprep.subr.bf16.mxu0 0
        %1357 = vmatpush2.bf16.msra.mxu0 0
        %1358 = vmatprep.subr.bf16.mxu0 0
        %1359 = vmatpush2.bf16.msra.mxu0 0
        %1360 = vmatprep.mubr.bf16.mxu0 0
        %1361 = vmatmul.mubr.bf16.gmra.mxu0 %v1323
        %v1362 = vpop.f32.mrf.mxu0
        %v1363 = vadd.f32 0.0, %v1362
        %v1364 = vpop.f32.mrf.mxu0
        %v1365 = vpop.f32.mrf.mxu0
        %v1366 = vpop.f32.mrf.mxu0
        %1367 = vdwg.mxu0
        %v1369 = vsel %vm1036, %v1225, 0
        %v1372 = vsel %vm1040, %v1229, 0
        %1374 = vmatprep.subr.bf16.mxu0 0
        %1375 = vmatpush1.bf16.msra.mxu0 0
        %1376 = vmatprep.subr.bf16.mxu0 0
        %1377 = vmatpush1.bf16.msra.mxu0 0
        %1378 = vmatprep.subr.bf16.mxu0 0
        %1379 = vmatpush1.bf16.msra.mxu0 0
        %1380 = vmatprep.subr.bf16.mxu0 0
        %1381 = vmatpush1.bf16.msra.mxu0 0
        %1382 = vmatprep.subr.bf16.mxu0 0
        %1383 = vmatpush1.bf16.msra.mxu0 0
        %1384 = vmatprep.subr.bf16.mxu0 0
        %1385 = vmatpush1.bf16.msra.mxu0 0
        %1386 = vmatprep.subr.bf16.mxu0 0
        %1387 = vmatpush1.bf16.msra.mxu0 0
        %1388 = vmatprep.subr.bf16.mxu0 0
        %1389 = vmatpush1.bf16.msra.mxu0 %v1372
        %1390 = vmatprep.subr.bf16.mxu0 0
        %1391 = vmatpush2.bf16.msra.mxu0 0
        %1392 = vmatprep.subr.bf16.mxu0 0
        %1393 = vmatpush2.bf16.msra.mxu0 0
        %1394 = vmatprep.subr.bf16.mxu0 0
        %1395 = vmatpush2.bf16.msra.mxu0 0
        %1396 = vmatprep.subr.bf16.mxu0 0
        %1397 = vmatpush2.bf16.msra.mxu0 0
        %1398 = vmatprep.subr.bf16.mxu0 0
        %1399 = vmatpush2.bf16.msra.mxu0 0
        %1400 = vmatprep.subr.bf16.mxu0 0
        %1401 = vmatpush2.bf16.msra.mxu0 0
        %1402 = vmatprep.subr.bf16.mxu0 0
        %1403 = vmatpush2.bf16.msra.mxu0 0
        %1404 = vmatprep.subr.bf16.mxu0 0
        %1405 = vmatpush2.bf16.msra.mxu0 0
        %1406 = vmatprep.mubr.bf16.mxu0 0
        %1407 = vmatmul.mubr.bf16.gmra.mxu0 %v1369
        %v1408 = vpop.f32.mrf.mxu0
        %v1409 = vadd.f32 0.0, %v1408
        %v1410 = vpop.f32.mrf.mxu0
        %v1411 = vpop.f32.mrf.mxu0
        %v1412 = vpop.f32.mrf.mxu0
        %1413 = vdwg.mxu0
        %v1414 = vsel %vm771, %v1271, 0.0
        %v1415 = vsel %vm771, %v1317, 0.0
        %v1416 = vadd.f32 %v1414, %v1415
        %v1417 = vsel %vm771, %v1363, 0.0
        %v1418 = vadd.f32 %v1416, %v1417
        %v1419 = vsel %vm771, %v1409, 0.0
        %v1420 = vadd.f32 %v1418, %v1419
        %v1421 = vadd.f32 %v768, %v1420
        %v1422 = vld [vmem:[%s735] sm:$0x1]
        %v1423 = vld [vmem:[%s738] sm:$0x1]
        %v1424 = vsel %vm771, %v1421, 0.0
        %1425 = vadd.xlane.f32.xlu0 %v1424
        %v1426 = vpop.xlane.xlu0 %1425
        %v1427 = vmul.f32 %v1426, %v775
        %v1428 = vsub.f32 %v1421, %v1427
        %v1429 = vmul.f32 %v1428, %v1428
        %v1430 = vsel %vm771, %v1429, 0.0
        %1431 = vadd.xlane.f32.xlu0 %v1430
        %v1432 = vpop.xlane.xlu0 %1431
        %v1433 = vmul.f32 %v1432, %v775
        %v1434 = vadd.f32 %v1433, 1e-05
        %v1435 = vrsqrt.pop %v1434
        %v1436 = vmul.f32 %v1428, %v1435
        %v1438 = vlaneseq
        %v1439 = vshrl.u32 %v1438, 7
        %v1440 = vsub.s32 0, %v1439
        %v1441 = vrot.slane %v1422, %v1440
        %v1443 = vmul.f32 %v1436, %v1441
        %v1445 = vlaneseq
        %v1446 = vshrl.u32 %v1445, 7
        %v1447 = vsub.s32 0, %v1446
        %v1448 = vrot.slane %v1423, %v1447
        %v1450 = vadd.f32 %v1443, %v1448
        %v1451 = vpack.c.bf16 %v1450, %v1450
        %v1452 = vld [vmem:[%s8] sm:$0xf]
        %v1454 = vsel %vm1036, %v1452, 0
        %v1457 = vsel %vm1040, %v1451, 0
        %1459 = vmatprep.subr.bf16.mxu0 0
        %1460 = vmatpush1.bf16.msra.mxu0 0
        %1461 = vmatprep.subr.bf16.mxu0 0
        %1462 = vmatpush1.bf16.msra.mxu0 0
        %1463 = vmatprep.subr.bf16.mxu0 0
        %1464 = vmatpush1.bf16.msra.mxu0 0
        %1465 = vmatprep.subr.bf16.mxu0 0
        %1466 = vmatpush1.bf16.msra.mxu0 0
        %1467 = vmatprep.subr.bf16.mxu0 0
        %1468 = vmatpush1.bf16.msra.mxu0 0
        %1469 = vmatprep.subr.bf16.mxu0 0
        %1470 = vmatpush1.bf16.msra.mxu0 0
        %1471 = vmatprep.subr.bf16.mxu0 0
        %1472 = vmatpush1.bf16.msra.mxu0 0
        %1473 = vmatprep.subr.bf16.mxu0 0
        %1474 = vmatpush1.bf16.msra.mxu0 %v1457
        %1475 = vmatprep.subr.bf16.mxu0 0
        %1476 = vmatpush2.bf16.msra.mxu0 0
        %1477 = vmatprep.subr.bf16.mxu0 0
        %1478 = vmatpush2.bf16.msra.mxu0 0
        %1479 = vmatprep.subr.bf16.mxu0 0
        %1480 = vmatpush2.bf16.msra.mxu0 0
        %1481 = vmatprep.subr.bf16.mxu0 0
        %1482 = vmatpush2.bf16.msra.mxu0 0
        %1483 = vmatprep.subr.bf16.mxu0 0
        %1484 = vmatpush2.bf16.msra.mxu0 0
        %1485 = vmatprep.subr.bf16.mxu0 0
        %1486 = vmatpush2.bf16.msra.mxu0 0
        %1487 = vmatprep.subr.bf16.mxu0 0
        %1488 = vmatpush2.bf16.msra.mxu0 0
        %1489 = vmatprep.subr.bf16.mxu0 0
        %1490 = vmatpush2.bf16.msra.mxu0 0
        %1491 = vmatprep.mubr.bf16.mxu0 0
        %1492 = vmatmul.mubr.bf16.gmra.mxu0 %v1454
        %v1493 = vpop.f32.mrf.mxu0
        %v1494 = vadd.f32 0.0, %v1493
        %v1495 = vpop.f32.mrf.mxu0
        %v1496 = vpop.f32.mrf.mxu0
        %v1497 = vpop.f32.mrf.mxu0
        %1498 = vdwg.mxu0
        %v1499 = vpack.c.bf16 %v1494, %v1494
        %v1500 = vld [vmem:[%s743] sm:$0xf]
        %v1501 = vld [vmem:[%s743 + $0x4] sm:$0xf]
        %v1502 = vld [vmem:[%s743 + $0x8] sm:$0xf]
        %v1503 = vld [vmem:[%s743 + $0xc] sm:$0xf]
        %v1508 = vunpack.c.l.b16 %v1500
        %v1509 = vunpack.c.l.b16 %v1501
        %v1510 = vunpack.c.l.b16 %v1502
        %v1511 = vunpack.c.l.b16 %v1503
        %v1512 = vpack.c.b16 %v1509, %v1508
        %v1513 = vpack.c.b16 %v1511, %v1510
        %v1517 = vsel %vm771, %v1499, 0
        %1519 = vmatprep.subr.bf16.mxu0 0
        %1520 = vmatpush1.bf16.msra.mxu0 0
        %1521 = vmatprep.subr.bf16.mxu0 0
        %1522 = vmatpush1.bf16.msra.mxu0 0
        %1523 = vmatprep.subr.bf16.mxu0 0
        %1524 = vmatpush1.bf16.msra.mxu0 0
        %1525 = vmatprep.subr.bf16.mxu0 0
        %1526 = vmatpush1.bf16.msra.mxu0 0
        %1527 = vmatprep.subr.bf16.mxu0 0
        %1528 = vmatpush1.bf16.msra.mxu0 0
        %1529 = vmatprep.subr.bf16.mxu0 0
        %1530 = vmatpush1.bf16.msra.mxu0 0
        %1531 = vmatprep.subr.bf16.mxu0 0
        %1532 = vmatpush1.bf16.msra.mxu0 %v1513
        %1533 = vmatprep.subr.bf16.mxu0 0
        %1534 = vmatpush1.bf16.msra.mxu0 %v1512
        %1535 = vmatprep.subr.bf16.mxu0 0
        %1536 = vmatpush2.bf16.msra.mxu0 0
        %1537 = vmatprep.subr.bf16.mxu0 0
        %1538 = vmatpush2.bf16.msra.mxu0 0
        %1539 = vmatprep.subr.bf16.mxu0 0
        %1540 = vmatpush2.bf16.msra.mxu0 0
        %1541 = vmatprep.subr.bf16.mxu0 0
        %1542 = vmatpush2.bf16.msra.mxu0 0
        %1543 = vmatprep.subr.bf16.mxu0 0
        %1544 = vmatpush2.bf16.msra.mxu0 0
        %1545 = vmatprep.subr.bf16.mxu0 0
        %1546 = vmatpush2.bf16.msra.mxu0 0
        %1547 = vmatprep.subr.bf16.mxu0 0
        %1548 = vmatpush2.bf16.msra.mxu0 0
        %1549 = vmatprep.subr.bf16.mxu0 0
        %1550 = vmatpush2.bf16.msra.mxu0 0
        %1551 = vmatprep.mubr.bf16.mxu0 0
        %1552 = vmatmul.mubr.bf16.gmra.mxu0 %v1517
        %v1553 = vpop.f32.mrf.mxu0
        %v1554 = vadd.f32 0.0, %v1553
        %v1555 = vpop.f32.mrf.mxu0
        %v1556 = vpop.f32.mrf.mxu0
        %v1557 = vpop.f32.mrf.mxu0
        %1558 = vdwg.mxu0
        %v1559 = vadd.f32 %v1421, %v1554
        %v1560 = vld [vmem:[%s746] sm:$0x1]
        %v1561 = vld [vmem:[%s749] sm:$0x1]
        %v1562 = vsel %vm771, %v1559, 0.0
        %1563 = vadd.xlane.f32.xlu0 %v1562
        %v1564 = vpop.xlane.xlu0 %1563
        %v1565 = vmul.f32 %v1564, %v775
        %v1566 = vsub.f32 %v1559, %v1565
        %v1567 = vmul.f32 %v1566, %v1566
        %v1568 = vsel %vm771, %v1567, 0.0
        %1569 = vadd.xlane.f32.xlu0 %v1568
        %v1570 = vpop.xlane.xlu0 %1569
        %v1571 = vmul.f32 %v1570, %v775
        %v1572 = vadd.f32 %v1571, 1e-05
        %v1573 = vrsqrt.pop %v1572
        %v1574 = vmul.f32 %v1566, %v1573
        %v1576 = vlaneseq
        %v1577 = vshrl.u32 %v1576, 7
        %v1578 = vsub.s32 0, %v1577
        %v1579 = vrot.slane %v1560, %v1578
        %v1581 = vmul.f32 %v1574, %v1579
        %v1583 = vlaneseq
        %v1584 = vshrl.u32 %v1583, 7
        %v1585 = vsub.s32 0, %v1584
        %v1586 = vrot.slane %v1561, %v1585
        %v1588 = vadd.f32 %v1581, %v1586
        %v1589 = vpack.c.bf16 %v1588, %v1588
        %v1590 = vld [vmem:[%s754] sm:$0xf]
        %v1591 = vld [vmem:[%s754 + $0x4] sm:$0xf]
        %v1592 = vld [vmem:[%s754 + $0x8] sm:$0xf]
        %v1593 = vld [vmem:[%s754 + $0xc] sm:$0xf]
        %v1598 = vunpack.c.l.b16 %v1590
        %v1599 = vunpack.c.l.b16 %v1591
        %v1600 = vunpack.c.l.b16 %v1592
        %v1601 = vunpack.c.l.b16 %v1593
        %v1602 = vpack.c.b16 %v1599, %v1598
        %v1603 = vpack.c.b16 %v1601, %v1600
        %v1607 = vsel %vm771, %v1589, 0
        %1609 = vmatprep.subr.bf16.mxu0 0
        %1610 = vmatpush1.bf16.msra.mxu0 0
        %1611 = vmatprep.subr.bf16.mxu0 0
        %1612 = vmatpush1.bf16.msra.mxu0 0
        %1613 = vmatprep.subr.bf16.mxu0 0
        %1614 = vmatpush1.bf16.msra.mxu0 0
        %1615 = vmatprep.subr.bf16.mxu0 0
        %1616 = vmatpush1.bf16.msra.mxu0 0
        %1617 = vmatprep.subr.bf16.mxu0 0
        %1618 = vmatpush1.bf16.msra.mxu0 0
        %1619 = vmatprep.subr.bf16.mxu0 0
        %1620 = vmatpush1.bf16.msra.mxu0 0
        %1621 = vmatprep.subr.bf16.mxu0 0
        %1622 = vmatpush1.bf16.msra.mxu0 %v1603
        %1623 = vmatprep.subr.bf16.mxu0 0
        %1624 = vmatpush1.bf16.msra.mxu0 %v1602
        %1625 = vmatprep.subr.bf16.mxu0 0
        %1626 = vmatpush2.bf16.msra.mxu0 0
        %1627 = vmatprep.subr.bf16.mxu0 0
        %1628 = vmatpush2.bf16.msra.mxu0 0
        %1629 = vmatprep.subr.bf16.mxu0 0
        %1630 = vmatpush2.bf16.msra.mxu0 0
        %1631 = vmatprep.subr.bf16.mxu0 0
        %1632 = vmatpush2.bf16.msra.mxu0 0
        %1633 = vmatprep.subr.bf16.mxu0 0
        %1634 = vmatpush2.bf16.msra.mxu0 0
        %1635 = vmatprep.subr.bf16.mxu0 0
        %1636 = vmatpush2.bf16.msra.mxu0 0
        %1637 = vmatprep.subr.bf16.mxu0 0
        %1638 = vmatpush2.bf16.msra.mxu0 0
        %1639 = vmatprep.subr.bf16.mxu0 0
        %1640 = vmatpush2.bf16.msra.mxu0 0
        %1641 = vmatprep.mubr.bf16.mxu0 0
        %1642 = vmatmul.mubr.bf16.gmra.mxu0 %v1607
        %v1643 = vpop.f32.mrf.mxu0
        %v1644 = vadd.f32 0.0, %v1643
        %v1645 = vpop.f32.mrf.mxu0
        %v1646 = vpop.f32.mrf.mxu0
        %v1647 = vpop.f32.mrf.mxu0
        %1648 = vdwg.mxu0
        %v1649 = vmul.f32 %v1644, 0.5
        %v1650 = vmul.f32 %v1644, 0.044715
        %v1651 = vmul.f32 %v1650, %v1644
        %v1652 = vmul.f32 %v1651, %v1644
        %v1653 = vadd.f32 %v1644, %v1652
        %v1654 = vmul.f32 %v1653, 0.7978846
        %v1655 = vtanh.pop %v1654
        %v1656 = vadd.f32 %v1655, 1.0
        %v1657 = vmul.f32 %v1649, %v1656
        %v1658 = vpack.c.bf16 %v1657, %v1657
        %v1659 = vld [vmem:[%s759] sm:$0xf]
        %v1660 = vld [vmem:[%s759 + $0x4] sm:$0xf]
        %v1661 = vld [vmem:[%s759 + $0x8] sm:$0xf]
        %v1662 = vld [vmem:[%s759 + $0xc] sm:$0xf]
        %v1663 = vld [vmem:[%s759 + $0x10] sm:$0xf]
        %v1664 = vld [vmem:[%s759 + $0x14] sm:$0xf]
        %v1665 = vld [vmem:[%s759 + $0x18] sm:$0xf]
        %v1666 = vld [vmem:[%s759 + $0x1c] sm:$0xf]
        %v1667 = vld [vmem:[%s759 + $0x20] sm:$0xf]
        %v1668 = vld [vmem:[%s759 + $0x24] sm:$0xf]
        %v1669 = vld [vmem:[%s759 + $0x28] sm:$0xf]
        %v1670 = vld [vmem:[%s759 + $0x2c] sm:$0xf]
        %v1671 = vld [vmem:[%s759 + $0x30] sm:$0xf]
        %v1672 = vld [vmem:[%s759 + $0x34] sm:$0xf]
        %v1673 = vld [vmem:[%s759 + $0x38] sm:$0xf]
        %v1674 = vld [vmem:[%s759 + $0x3c] sm:$0xf]
        %v1691 = vunpack.c.l.b16 %v1659
        %v1692 = vunpack.c.l.b16 %v1660
        %v1693 = vunpack.c.l.b16 %v1661
        %v1694 = vunpack.c.l.b16 %v1662
        %v1695 = vunpack.c.l.b16 %v1663
        %v1696 = vunpack.c.l.b16 %v1664
        %v1697 = vunpack.c.l.b16 %v1665
        %v1698 = vunpack.c.l.b16 %v1666
        %v1699 = vunpack.c.l.b16 %v1667
        %v1700 = vunpack.c.l.b16 %v1668
        %v1701 = vunpack.c.l.b16 %v1669
        %v1702 = vunpack.c.l.b16 %v1670
        %v1703 = vunpack.c.l.b16 %v1671
        %v1704 = vunpack.c.l.b16 %v1672
        %v1705 = vunpack.c.l.b16 %v1673
        %v1706 = vunpack.c.l.b16 %v1674
        %v1707 = vpack.c.b16 %v1692, %v1691
        %v1708 = vpack.c.b16 %v1694, %v1693
        %v1709 = vpack.c.b16 %v1696, %v1695
        %v1710 = vpack.c.b16 %v1698, %v1697
        %v1711 = vpack.c.b16 %v1700, %v1699
        %v1712 = vpack.c.b16 %v1702, %v1701
        %v1713 = vpack.c.b16 %v1704, %v1703
        %v1714 = vpack.c.b16 %v1706, %v1705
        %1723 = vmatprep.subr.bf16.mxu0 0
        %1724 = vmatpush1.bf16.msra.mxu0 %v1714
        %1725 = vmatprep.subr.bf16.mxu0 0
        %1726 = vmatpush1.bf16.msra.mxu0 %v1713
        %1727 = vmatprep.subr.bf16.mxu0 0
        %1728 = vmatpush1.bf16.msra.mxu0 %v1712
        %1729 = vmatprep.subr.bf16.mxu0 0
        %1730 = vmatpush1.bf16.msra.mxu0 %v1711
        %1731 = vmatprep.subr.bf16.mxu0 0
        %1732 = vmatpush1.bf16.msra.mxu0 %v1710
        %1733 = vmatprep.subr.bf16.mxu0 0
        %1734 = vmatpush1.bf16.msra.mxu0 %v1709
        %1735 = vmatprep.subr.bf16.mxu0 0
        %1736 = vmatpush1.bf16.msra.mxu0 %v1708
        %1737 = vmatprep.subr.bf16.mxu0 0
        %1738 = vmatpush1.bf16.msra.mxu0 %v1707
        %1739 = vmatprep.subr.bf16.mxu0 0
        %1740 = vmatpush2.bf16.msra.mxu0 0
        %1741 = vmatprep.subr.bf16.mxu0 0
        %1742 = vmatpush2.bf16.msra.mxu0 0
        %1743 = vmatprep.subr.bf16.mxu0 0
        %1744 = vmatpush2.bf16.msra.mxu0 0
        %1745 = vmatprep.subr.bf16.mxu0 0
        %1746 = vmatpush2.bf16.msra.mxu0 0
        %1747 = vmatprep.subr.bf16.mxu0 0
        %1748 = vmatpush2.bf16.msra.mxu0 0
        %1749 = vmatprep.subr.bf16.mxu0 0
        %1750 = vmatpush2.bf16.msra.mxu0 0
        %1751 = vmatprep.subr.bf16.mxu0 0
        %1752 = vmatpush2.bf16.msra.mxu0 0
        %1753 = vmatprep.subr.bf16.mxu0 0
        %1754 = vmatpush2.bf16.msra.mxu0 0
        %1755 = vmatprep.mubr.bf16.mxu0 0
        %1756 = vmatmul.mubr.bf16.gmra.mxu0 %v1658
        %v1757 = vpop.f32.mrf.mxu0
        %v1758 = vadd.f32 0.0, %v1757
        %v1759 = vpop.f32.mrf.mxu0
        %v1760 = vpop.f32.mrf.mxu0
        %v1761 = vpop.f32.mrf.mxu0
        %1762 = vdwg.mxu0
        %v1763 = vadd.f32 %v1559, %v1758
        %1764 = vst.msk [vmem:[#allocation2] sm:$0xff] %vm771, %v1763
        %p1765 = scmp.eq.s32.totalorder %s36, 1
        // Predicated region
        $region93: #{metaformer_forward.1} parent=87 // pred_check
          %p1766 = pneg %p1765
        $region94: #{metaformer_forward.1} parent=87 // pred_check_branch
          %1768 = sbr.rel (%p1766) target = $region96
        $region95: #{metaformer_forward.1} parent=87 // pred_region
          %v1769 = vld [vmem:[%s14] sm:$0x1]
          %v1770 = vld [vmem:[%s15] sm:$0x1]
          %v1771 = vsel %vm771, %v1763, 0.0
          %1772 = vadd.xlane.f32.xlu0 %v1771
          %v1773 = vpop.xlane.xlu0 %1772
          %v1774 = vmul.f32 %v1773, %v775
          %v1775 = vsub.f32 %v1763, %v1774
          %v1776 = vmul.f32 %v1775, %v1775
          %v1777 = vsel %vm771, %v1776, 0.0
          %1778 = vadd.xlane.f32.xlu0 %v1777
          %v1779 = vpop.xlane.xlu0 %1778
          %v1780 = vmul.f32 %v1779, %v775
          %v1781 = vadd.f32 %v1780, 1e-05
          %v1782 = vrsqrt.pop %v1781
          %v1783 = vmul.f32 %v1775, %v1782
          %v1785 = vlaneseq
          %v1786 = vshrl.u32 %v1785, 7
          %v1787 = vsub.s32 0, %v1786
          %v1788 = vrot.slane %v1769, %v1787
          %v1790 = vmul.f32 %v1783, %v1788
          %v1792 = vlaneseq
          %v1793 = vshrl.u32 %v1792, 7
          %v1794 = vsub.s32 0, %v1793
          %v1795 = vrot.slane %v1770, %v1794
          %v1797 = vadd.f32 %v1790, %v1795
          %v1798 = vpack.c.bf16 %v1797, %v1797
          %v1799 = vld [vmem:[%s16] sm:$0xf]
          %v1800 = vld [vmem:[%s16 + $0x4] sm:$0xf]
          %v1801 = vld [vmem:[%s16 + $0x8] sm:$0xf]
          %v1802 = vld [vmem:[%s16 + $0xc] sm:$0xf]
          %v1807 = vunpack.c.l.b16 %v1799
          %v1808 = vunpack.c.l.b16 %v1800
          %v1809 = vunpack.c.l.b16 %v1801
          %v1810 = vunpack.c.l.b16 %v1802
          %v1811 = vpack.c.b16 %v1808, %v1807
          %v1812 = vpack.c.b16 %v1810, %v1809
          %v1816 = vsel %vm771, %v1798, 0
          %1818 = vmatprep.subr.bf16.mxu0 0
          %1819 = vmatpush1.bf16.msra.mxu0 0
          %1820 = vmatprep.subr.bf16.mxu0 0
          %1821 = vmatpush1.bf16.msra.mxu0 0
          %1822 = vmatprep.subr.bf16.mxu0 0
          %1823 = vmatpush1.bf16.msra.mxu0 0
          %1824 = vmatprep.subr.bf16.mxu0 0
          %1825 = vmatpush1.bf16.msra.mxu0 0
          %1826 = vmatprep.subr.bf16.mxu0 0
          %1827 = vmatpush1.bf16.msra.mxu0 0
          %1828 = vmatprep.subr.bf16.mxu0 0
          %1829 = vmatpush1.bf16.msra.mxu0 0
          %1830 = vmatprep.subr.bf16.mxu0 0
          %1831 = vmatpush1.bf16.msra.mxu0 %v1812
          %1832 = vmatprep.subr.bf16.mxu0 0
          %1833 = vmatpush1.bf16.msra.mxu0 %v1811
          %1834 = vmatprep.subr.bf16.mxu0 0
          %1835 = vmatpush2.bf16.msra.mxu0 0
          %1836 = vmatprep.subr.bf16.mxu0 0
          %1837 = vmatpush2.bf16.msra.mxu0 0
          %1838 = vmatprep.subr.bf16.mxu0 0
          %1839 = vmatpush2.bf16.msra.mxu0 0
          %1840 = vmatprep.subr.bf16.mxu0 0
          %1841 = vmatpush2.bf16.msra.mxu0 0
          %1842 = vmatprep.subr.bf16.mxu0 0
          %1843 = vmatpush2.bf16.msra.mxu0 0
          %1844 = vmatprep.subr.bf16.mxu0 0
          %1845 = vmatpush2.bf16.msra.mxu0 0
          %1846 = vmatprep.subr.bf16.mxu0 0
          %1847 = vmatpush2.bf16.msra.mxu0 0
          %1848 = vmatprep.subr.bf16.mxu0 0
          %1849 = vmatpush2.bf16.msra.mxu0 0
          %1850 = vmatprep.mubr.bf16.mxu0 0
          %1851 = vmatmul.mubr.bf16.gmra.mxu0 %v1816
          %v1852 = vpop.f32.mrf.mxu0
          %v1853 = vadd.f32 0.0, %v1852
          %v1854 = vpop.f32.mrf.mxu0
          %v1855 = vpop.f32.mrf.mxu0
          %v1856 = vpop.f32.mrf.mxu0
          %1857 = vdwg.mxu0
          %1858 = vst [vmem:[%s707] sm:$0xff] %v1853
        $region96: #{metaformer_forward.1} parent=87 // pred_fallthru
          _
        %s1859 = sand.u32 %s473, 1
        %s1860 = scalar_lea.sflag [#allocation4], %s1859
        %s1861 = sand.u32 %s473, 1
        %s1862 = smul.addr %s1861, 8
        %s1863 = scalar_lea.vmem [#allocation3], %s1862
        // Predicated region
        $region97: #{metaformer_forward.1} parent=87 // pred_check
          %p1864 = pneg %p483
        $region98: #{metaformer_forward.1} parent=87 // pred_check_branch
          %1866 = sbr.rel (%p1864) target = $region100
        $region99: #{metaformer_forward.1} parent=87 // pred_region
          %s1868 = ssub.s32 128, 128
          %1869 = vsyncadd %s1860, %s1868
          %s1870 = smul.addr %s35, 128
          %s1871 = scalar_lea.hbm %s17, %s1870
          %s1873 = sshll.u32 %s1863, 4
          %s1874 = int_to_ptr.vmem [resolvable:$true] %s1873
          %1876 = dma.vmem_to_hbm [thread:$0]  %s1874, 128, %s1871, %s1860
        $region100: #{metaformer_forward.1} parent=87 // pred_fallthru
          _
      $region88: #{metaformer_forward.1} parent=5 // pred_fallthru
        _
      %p1877 = scmp.le.s32.totalorder 2, %s26
      // Predicated region
      $region101: #{metaformer_forward.1} parent=5 // pred_check
        %p1878 = pneg %p1877
      $region102: #{metaformer_forward.1} parent=5 // pred_check_branch
        %1880 = sbr.rel (%p1878) target = $region104
      $region103: #{metaformer_forward.1} parent=5 // pred_region
        %s1881 = ssub.s32 %s26, 2
        // Predicated region
        $region105: #{metaformer_forward.1} parent=103 // pred_check
          %p1882 = pneg %p489
        $region106: #{metaformer_forward.1} parent=103 // pred_check_branch
          %1884 = sbr.rel (%p1882) target = $region108
        $region107: #{metaformer_forward.1} parent=103 // pred_region
          %s1885 = sand.u32 %s474, 1
          %s1886 = scalar_lea.sflag [#allocation4], %s1885
          %s1887 = sand.u32 %s474, 1
          %s1888 = smul.addr %s1887, 8
          %s1889 = scalar_lea.vmem [#allocation3], %s1888
          %1890 = dma.done %s1886, 128
        $region108: #{metaformer_forward.1} parent=103 // pred_fallthru
          _
      $region104: #{metaformer_forward.1} parent=5 // pred_fallthru
        _
    $region6: #{metaformer_forward.1} parent=1 // loop_footer
      %s30 = sadd.s32 1, %s26
    $region7: #{metaformer_forward.1} parent=1 // loop_footer_branch
      %25 = sbr.rel target = $region3
    $region8: #{metaformer_forward.1} parent=1 // loop_exit
      _
    %1891 = vsyncpa [#allocation4], 1
    %s1892 = scalar_lea.sflag [#allocation4], 1
    %1893 = vsyncpa %s1892, 1

</llo_original>
